<compile_context>
chip_gen: v7x
topology: tpu7x:2x2x1
jax: 0.10.0
libtpu: 0.0.40
codegen_flags: <defaults>
</compile_context>

<pallas_src>
import jax
import jax.numpy as jnp
import numpy as np
from jax import lax
from jax.experimental import pallas as pl
from jax.experimental.pallas import tpu as pltpu


def make_attention_kernel(num_heads, head_dim, q_tile,
                          output_attentions, matmul_dtype=None):
    embed_dim = num_heads * head_dim

    def cast(a):
        return a.astype(matmul_dtype) if matmul_dtype is not None else a

    def kernel(x_ref, wqkv_ref, bqkv_ref, wo_ref, bo_ref, *rest):
        if output_attentions:
            out_ref, attn_ref, qkv_scr, ctx_scr = rest
        else:
            out_ref, qkv_scr, ctx_scr = rest
            attn_ref = None

        qi = pl.program_id(1)

        # Fused QKV projection for the whole sequence, computed once per batch
        # element.  qi is the innermost ("arbitrary") grid axis, so the VMEM
        # scratch carries Q|K|V across all q-tiles of this batch element.
        @pl.when(qi == 0)
        def _():
            x = x_ref[0]                                                # (S, E)
            qkv = jnp.dot(cast(x), cast(wqkv_ref[...]),
                          preferred_element_type=jnp.float32)          # (S, 3E)
            qkv_scr[...] = qkv + bqkv_ref[...].astype(jnp.float32)

        row0 = pl.multiple_of(qi * q_tile, q_tile)

        # Per-head attention on a (q_tile, S) score tile.  Static head loop:
        # all slices below are static in the lane dimension.
        for h in range(num_heads):
            c0 = h * head_dim
            q_h = qkv_scr[pl.ds(row0, q_tile), pl.ds(c0, head_dim)]            # (TQ, hd)
            k_h = qkv_scr[:, pl.ds(embed_dim + c0, head_dim)]                  # (S,  hd)
            v_h = qkv_scr[:, pl.ds(2 * embed_dim + c0, head_dim)]              # (S,  hd)

            # scores = (scale*q_h) @ k_h^T; scale already folded into W_q/b_q.
            scores = lax.dot_general(
                cast(q_h), cast(k_h), (((1,), (1,)), ((), ())),
                preferred_element_type=jnp.float32)                            # (TQ, S)

            # Numerically-stable softmax in f32.
            scores = scores - jnp.max(scores, axis=-1, keepdims=True)
            p = jnp.exp(scores)
            denom = jnp.sum(p, axis=-1, keepdims=True)                         # (TQ, 1)
            r = pl.reciprocal(denom, approx=True)        # EUP vrcp (free slot)
            r = r * (2.0 - denom * r)                    # Newton step -> full f32 accuracy
            p = p * r

            if output_attentions:
                attn_ref[0, h] = p.astype(attn_ref.dtype)

            # This head's context, written into its column block of the
            # concatenated context scratch.
            ctx_scr[:, pl.ds(c0, head_dim)] = jnp.dot(
                cast(p), cast(v_h), preferred_element_type=jnp.float32)        # (TQ, hd)

        # Fused output projection over the full embedding dim (f32 accumulate).
        out = jnp.dot(cast(ctx_scr[...]), cast(wo_ref[...]),
                      preferred_element_type=jnp.float32)
        out = out + bo_ref[...].astype(jnp.float32)
        out_ref[0] = out.astype(out_ref.dtype)

    return kernel


def siglip_attention(hidden_states, params, num_heads, *, q_tile=None,
                     output_attentions=True, matmul_dtype=None):
    """hidden_states: (B, S, E). Returns (attn_output, attn_weights|None)."""
    B, S, E = hidden_states.shape
    assert E % num_heads == 0
    hd = E // num_heads
    scale = hd ** (-0.5)

    if q_tile is None:
        q_tile = S
        for t in (256, 128, 64, 32, 16, 8):
            if S % t == 0:
                q_tile = t
                break
    assert S % q_tile == 0, "q_tile must divide seq_len"

    # nn.Linear: y = x @ W.T + b with W of shape (out, in).  Pre-transpose and
    # fuse Q/K/V into one (E, 3E) operand so the projection is one full-width
    # MXU matmul.  The attention scale is folded into the Q weights/bias so no
    # score rescale is needed inside the kernel.
    w_qkv = jnp.concatenate(
        [params["q_w"].T * scale, params["k_w"].T, params["v_w"].T], axis=1)  # (E, 3E)
    b_qkv = jnp.concatenate(
        [params["q_b"] * scale, params["k_b"], params["v_b"]]).reshape(1, 3 * E)
    w_o = params["o_w"].T                                                     # (E, E)
    b_o = params["o_b"].reshape(1, E)

    grid = (B, S // q_tile)

    in_specs = [
        pl.BlockSpec((1, S, E), lambda b, qi: (b, 0, 0)),       # x: full sequence per batch
        pl.BlockSpec((E, 3 * E), lambda b, qi: (0, 0)),         # fused QKV weight (VMEM-resident)
        pl.BlockSpec((1, 3 * E), lambda b, qi: (0, 0)),         # fused QKV bias
        pl.BlockSpec((E, E), lambda b, qi: (0, 0)),             # out-proj weight (VMEM-resident)
        pl.BlockSpec((1, E), lambda b, qi: (0, 0)),             # out-proj bias
    ]

    out_shapes = [jax.ShapeDtypeStruct((B, S, E), hidden_states.dtype)]
    out_specs = [pl.BlockSpec((1, q_tile, E), lambda b, qi: (b, qi, 0))]
    if output_attentions:
        out_shapes.append(
            jax.ShapeDtypeStruct((B, num_heads, S, S), hidden_states.dtype))
        out_specs.append(
            pl.BlockSpec((1, num_heads, q_tile, S), lambda b, qi: (b, 0, qi, 0)))

    scratch_shapes = [
        pltpu.VMEM((S, 3 * E), jnp.float32),    # fused Q|K|V for the whole sequence
        pltpu.VMEM((q_tile, E), jnp.float32),   # per-tile context, concatenated over heads
    ]

    f = pl.pallas_call(
        make_attention_kernel(num_heads, hd, q_tile,
                              output_attentions, matmul_dtype),
        out_shape=tuple(out_shapes) if output_attentions else out_shapes[0],
        grid_spec=pltpu.PrefetchScalarGridSpec(
            num_scalar_prefetch=0,
            grid=grid,
            in_specs=in_specs,
            out_specs=tuple(out_specs) if output_attentions else out_specs[0],
            scratch_shapes=scratch_shapes,
        ),
        compiler_params=pltpu.CompilerParams(
            # batch axis parallel (megacore / v7x 2-TC); q-tile axis arbitrary
            # because the QKV scratch is computed at qi==0 and reused.
            dimension_semantics=("parallel", "arbitrary"),
            vmem_limit_bytes=32 * 1024 * 1024,
        ),
    )
    res = f(hidden_states, w_qkv, b_qkv, w_o, b_o)
    if output_attentions:
        return res[0], res[1]
    return res, None


def reference(hidden_states, params, num_heads):
    B, S, E = hidden_states.shape
    hd = E // num_heads
    scale = hd ** (-0.5)

    def lin(x, W, b):
        return x @ W.T + b

    q = lin(hidden_states, params["q_w"], params["q_b"])
    k = lin(hidden_states, params["k_w"], params["k_b"])
    v = lin(hidden_states, params["v_w"], params["v_b"])
    q = q.reshape(B, S, num_heads, hd).transpose(0, 2, 1, 3)
    k = k.reshape(B, S, num_heads, hd).transpose(0, 2, 1, 3)
    v = v.reshape(B, S, num_heads, hd).transpose(0, 2, 1, 3)
    aw = jnp.einsum("bhqd,bhkd->bhqk", q, k) * scale
    aw = jax.nn.softmax(aw.astype(jnp.float32), axis=-1).astype(q.dtype)
    ao = jnp.einsum("bhqk,bhkd->bhqd", aw, v)
    ao = ao.transpose(0, 2, 1, 3).reshape(B, S, E)
    ao = lin(ao, params["o_w"], params["o_b"])
    return ao, aw


if __name__ == "__main__":
    # Small config consistent with SiglipAttention: hidden_size=32, heads=4.
    # S=16 with q_tile=8 exercises the q-tile grid axis (grid = (2, 2)).
    B, S, E, H = 2, 16, 32, 4
    key = jax.random.PRNGKey(0)
    keys = jax.random.split(key, 9)

    params = {
        "q_w": jax.random.normal(keys[0], (E, E), jnp.float32) * 0.05,
        "q_b": jax.random.normal(keys[1], (E,), jnp.float32) * 0.05,
        "k_w": jax.random.normal(keys[2], (E, E), jnp.float32) * 0.05,
        "k_b": jax.random.normal(keys[3], (E,), jnp.float32) * 0.05,
        "v_w": jax.random.normal(keys[4], (E, E), jnp.float32) * 0.05,
        "v_b": jax.random.normal(keys[5], (E,), jnp.float32) * 0.05,
        "o_w": jax.random.normal(keys[6], (E, E), jnp.float32) * 0.05,
        "o_b": jax.random.normal(keys[7], (E,), jnp.float32) * 0.05,
    }
    x = jax.random.normal(keys[8], (B, S, E), jnp.float32)

    ref_out, ref_attn = reference(x, params, H)

    # With attention weights (matches the PyTorch module's return signature).
    out, attn_w = siglip_attention(x, params, H, q_tile=8, output_attentions=True)
    out = jax.block_until_ready(out)
    attn_w = jax.block_until_ready(attn_w)
    np.testing.assert_allclose(np.asarray(out), np.asarray(ref_out), rtol=1e-4, atol=1e-4)
    np.testing.assert_allclose(np.asarray(attn_w), np.asarray(ref_attn), rtol=1e-4, atol=1e-4)

    # Fast path: skip the (B,H,S,S) attention-weights writeback.
    out2, none_attn = siglip_attention(x, params, H, q_tile=8, output_attentions=False)
    out2 = jax.block_until_ready(out2)
    assert none_attn is None
    np.testing.assert_allclose(np.asarray(out2), np.asarray(ref_out), rtol=1e-4, atol=1e-4)

    print("KERNEL_OK")
</pallas_src>

<mosaic_0001>
module attributes {stable_mosaic.version = 11 : i64} {
  func.func @kernel(%arg0: i32, %arg1: i32, %arg2: memref<1x16x32xf32, #tpu.memory_space<vmem>>, %arg3: memref<32x96xf32, #tpu.memory_space<vmem>>, %arg4: memref<1x96xf32, #tpu.memory_space<vmem>>, %arg5: memref<32x32xf32, #tpu.memory_space<vmem>>, %arg6: memref<1x32xf32, #tpu.memory_space<vmem>>, %arg7: memref<1x8x32xf32, #tpu.memory_space<vmem>>, %arg8: memref<1x4x8x16xf32, #tpu.memory_space<vmem>>, %arg9: memref<16x96xf32, #tpu.memory_space<vmem>>, %arg10: memref<8x32xf32, #tpu.memory_space<vmem>>) attributes {dimension_semantics = [#tpu.dimension_semantics<parallel>, #tpu.dimension_semantics<arbitrary>], iteration_bounds = array<i64: 2, 2>, scalar_prefetch = 0 : i64, scratch_operands = 2 : i64, tpu.core_type = #tpu.core_type<tc>, window_params = [{transform_indices = @transform_0, window_bounds = array<i64: 1, 16, 32>}, {pipeline_mode = #tpu.pipeline_mode<synchronous>, transform_indices = @transform_1, window_bounds = array<i64: 32, 96>}, {pipeline_mode = #tpu.pipeline_mode<synchronous>, transform_indices = @transform_2, window_bounds = array<i64: 1, 96>}, {pipeline_mode = #tpu.pipeline_mode<synchronous>, transform_indices = @transform_3, window_bounds = array<i64: 32, 32>}, {pipeline_mode = #tpu.pipeline_mode<synchronous>, transform_indices = @transform_4, window_bounds = array<i64: 1, 32>}, {transform_indices = @transform_5, window_bounds = array<i64: 1, 8, 32>}, {transform_indices = @transform_6, window_bounds = array<i64: 1, 4, 8, 16>}]} {
    %c0_i32 = arith.constant 0 : i32
    %0 = arith.cmpi eq, %arg1, %c0_i32 : i32
    %1 = arith.extui %0 : i1 to i32
    %c0_i32_0 = arith.constant 0 : i32
    %2 = arith.cmpi ne, %1, %c0_i32_0 : i32
    scf.if %2 {
      %c0_59 = arith.constant 0 : index
      %c0_60 = arith.constant 0 : index
      %c0_61 = arith.constant 0 : index
      %110 = vector.load %arg2[%c0_59, %c0_60, %c0_61] : memref<1x16x32xf32, #tpu.memory_space<vmem>>, vector<1x16x32xf32>
      %111 = vector.shape_cast %110 : vector<1x16x32xf32> to vector<16x32xf32>
      %c0_62 = arith.constant 0 : index
      %c0_63 = arith.constant 0 : index
      %112 = vector.load %arg3[%c0_62, %c0_63] : memref<32x96xf32, #tpu.memory_space<vmem>>, vector<32x96xf32>
      %cst_64 = arith.constant dense<0.000000e+00> : vector<16x96xf32>
      %113 = tpu.matmul %111, %112, %cst_64 {dimension_numbers = #tpu.dot_dimension_numbers<[1], [0], [0], [1], [0, 0, 1, 1], [], []>} : vector<16x32xf32>, vector<32x96xf32>, vector<16x96xf32> -> vector<16x96xf32>
      %c0_65 = arith.constant 0 : index
      %c0_66 = arith.constant 0 : index
      %114 = vector.load %arg4[%c0_65, %c0_66] : memref<1x96xf32, #tpu.memory_space<vmem>>, vector<1x96xf32>
      %115 = vector.broadcast %114 : vector<1x96xf32> to vector<16x96xf32>
      %116 = arith.addf %113, %115 : vector<16x96xf32>
      %c0_67 = arith.constant 0 : index
      %c0_68 = arith.constant 0 : index
      %117 = vector.load %arg9[%c0_67, %c0_68] : memref<16x96xf32, #tpu.memory_space<vmem>>, vector<16x96xf32>
      tpu.vector_store %arg9[%c0_67, %c0_68], %116 {strides = array<i32>} : memref<16x96xf32, #tpu.memory_space<vmem>>, vector<16x96xf32>,
    } else {
    }
    %c8_i32 = arith.constant 8 : i32
    %3 = arith.muli %arg1, %c8_i32 : i32
    %4 = tpu.assume_multiple %3, 8 : i32
    %5 = arith.index_cast %4 : i32 to index
    %c0 = arith.constant 0 : index
    %6 = vector.load %arg9[%5, %c0] : memref<16x96xf32, #tpu.memory_space<vmem>>, vector<8x8xf32>
    %c0_1 = arith.constant 0 : index
    %c32 = arith.constant 32 : index
    %7 = vector.load %arg9[%c0_1, %c32] : memref<16x96xf32, #tpu.memory_space<vmem>>, vector<16x8xf32>
    %c0_2 = arith.constant 0 : index
    %c64 = arith.constant 64 : index
    %8 = vector.load %arg9[%c0_2, %c64] : memref<16x96xf32, #tpu.memory_space<vmem>>, vector<16x8xf32>
    %cst = arith.constant dense<0.000000e+00> : vector<8x16xf32>
    %9 = tpu.matmul %6, %7, %cst {dimension_numbers = #tpu.dot_dimension_numbers<[1], [1], [0], [0], [0, 0, 1, 0], [], []>} : vector<8x8xf32>, vector<16x8xf32>, vector<8x16xf32> -> vector<8x16xf32>
    %cst_3 = arith.constant dense<0xFF800000> : vector<8xf32>
    %10 = vector.multi_reduction <maximumf>, %9, %cst_3 [1] : vector<8x16xf32> to vector<8xf32>
    %11 = vector.shape_cast %10 : vector<8xf32> to vector<8x1xf32>
    %12 = vector.broadcast %11 : vector<8x1xf32> to vector<8x16xf32>
    %13 = arith.subf %9, %12 : vector<8x16xf32>
    %14 = math.exp %13 : vector<8x16xf32>
    %cst_4 = arith.constant dense<0.000000e+00> : vector<8xf32>
    %15 = vector.multi_reduction <add>, %14, %cst_4 [1] : vector<8x16xf32> to vector<8xf32>
    %16 = vector.shape_cast %15 : vector<8xf32> to vector<8x1xf32>
    %17 = tpu.reciprocal %16 {approx = true} : vector<8x1xf32> -> vector<8x1xf32>
    %18 = arith.mulf %16, %17 : vector<8x1xf32>
    %cst_5 = arith.constant 2.000000e+00 : f32
    %19 = vector.broadcast %cst_5 : f32 to vector<8x1xf32>
    %20 = arith.subf %19, %18 : vector<8x1xf32>
    %21 = arith.mulf %17, %20 : vector<8x1xf32>
    %22 = vector.broadcast %21 : vector<8x1xf32> to vector<8x16xf32>
    %23 = arith.mulf %14, %22 : vector<8x16xf32>
    %c0_6 = arith.constant 0 : index
    %c0_7 = arith.constant 0 : index
    %c0_8 = arith.constant 0 : index
    %c0_9 = arith.constant 0 : index
    %24 = vector.load %arg8[%c0_6, %c0_7, %c0_8, %c0_9] : memref<1x4x8x16xf32, #tpu.memory_space<vmem>>, vector<1x1x8x16xf32>
    %25 = vector.shape_cast %24 : vector<1x1x8x16xf32> to vector<8x16xf32>
    %26 = vector.shape_cast %23 : vector<8x16xf32> to vector<1x1x8x16xf32>
    tpu.vector_store %arg8[%c0_6, %c0_7, %c0_8, %c0_9], %26 {strides = array<i32>} : memref<1x4x8x16xf32, #tpu.memory_space<vmem>>, vector<1x1x8x16xf32>,
    %cst_10 = arith.constant dense<0.000000e+00> : vector<8x8xf32>
    %27 = tpu.matmul %23, %8, %cst_10 {dimension_numbers = #tpu.dot_dimension_numbers<[1], [0], [0], [1], [0, 0, 1, 1], [], []>} : vector<8x16xf32>, vector<16x8xf32>, vector<8x8xf32> -> vector<8x8xf32>
    %c0_11 = arith.constant 0 : index
    %c0_12 = arith.constant 0 : index
    %28 = vector.load %arg10[%c0_11, %c0_12] : memref<8x32xf32, #tpu.memory_space<vmem>>, vector<8x8xf32>
    tpu.vector_store %arg10[%c0_11, %c0_12], %27 {strides = array<i32>} : memref<8x32xf32, #tpu.memory_space<vmem>>, vector<8x8xf32>,
    %29 = arith.index_cast %4 : i32 to index
    %c8 = arith.constant 8 : index
    %30 = vector.load %arg9[%29, %c8] : memref<16x96xf32, #tpu.memory_space<vmem>>, vector<8x8xf32>
    %c0_13 = arith.constant 0 : index
    %c40 = arith.constant 40 : index
    %31 = vector.load %arg9[%c0_13, %c40] : memref<16x96xf32, #tpu.memory_space<vmem>>, vector<16x8xf32>
    %c0_14 = arith.constant 0 : index
    %c72 = arith.constant 72 : index
    %32 = vector.load %arg9[%c0_14, %c72] : memref<16x96xf32, #tpu.memory_space<vmem>>, vector<16x8xf32>
    %cst_15 = arith.constant dense<0.000000e+00> : vector<8x16xf32>
    %33 = tpu.matmul %30, %31, %cst_15 {dimension_numbers = #tpu.dot_dimension_numbers<[1], [1], [0], [0], [0, 0, 1, 0], [], []>} : vector<8x8xf32>, vector<16x8xf32>, vector<8x16xf32> -> vector<8x16xf32>
    %cst_16 = arith.constant dense<0xFF800000> : vector<8xf32>
    %34 = vector.multi_reduction <maximumf>, %33, %cst_16 [1] : vector<8x16xf32> to vector<8xf32>
    %35 = vector.shape_cast %34 : vector<8xf32> to vector<8x1xf32>
    %36 = vector.broadcast %35 : vector<8x1xf32> to vector<8x16xf32>
    %37 = arith.subf %33, %36 : vector<8x16xf32>
    %38 = math.exp %37 : vector<8x16xf32>
    %cst_17 = arith.constant dense<0.000000e+00> : vector<8xf32>
    %39 = vector.multi_reduction <add>, %38, %cst_17 [1] : vector<8x16xf32> to vector<8xf32>
    %40 = vector.shape_cast %39 : vector<8xf32> to vector<8x1xf32>
    %41 = tpu.reciprocal %40 {approx = true} : vector<8x1xf32> -> vector<8x1xf32>
    %42 = arith.mulf %40, %41 : vector<8x1xf32>
    %cst_18 = arith.constant 2.000000e+00 : f32
    %43 = vector.broadcast %cst_18 : f32 to vector<8x1xf32>
    %44 = arith.subf %43, %42 : vector<8x1xf32>
    %45 = arith.mulf %41, %44 : vector<8x1xf32>
    %46 = vector.broadcast %45 : vector<8x1xf32> to vector<8x16xf32>
    %47 = arith.mulf %38, %46 : vector<8x16xf32>
    %c0_19 = arith.constant 0 : index
    %c1 = arith.constant 1 : index
    %c0_20 = arith.constant 0 : index
    %c0_21 = arith.constant 0 : index
    %48 = vector.load %arg8[%c0_19, %c1, %c0_20, %c0_21] : memref<1x4x8x16xf32, #tpu.memory_space<vmem>>, vector<1x1x8x16xf32>
    %49 = vector.shape_cast %48 : vector<1x1x8x16xf32> to vector<8x16xf32>
    %50 = vector.shape_cast %47 : vector<8x16xf32> to vector<1x1x8x16xf32>
    tpu.vector_store %arg8[%c0_19, %c1, %c0_20, %c0_21], %50 {strides = array<i32>} : memref<1x4x8x16xf32, #tpu.memory_space<vmem>>, vector<1x1x8x16xf32>,
    %cst_22 = arith.constant dense<0.000000e+00> : vector<8x8xf32>
    %51 = tpu.matmul %47, %32, %cst_22 {dimension_numbers = #tpu.dot_dimension_numbers<[1], [0], [0], [1], [0, 0, 1, 1], [], []>} : vector<8x16xf32>, vector<16x8xf32>, vector<8x8xf32> -> vector<8x8xf32>
    %c0_23 = arith.constant 0 : index
    %c8_24 = arith.constant 8 : index
    %52 = vector.load %arg10[%c0_23, %c8_24] : memref<8x32xf32, #tpu.memory_space<vmem>>, vector<8x8xf32>
    tpu.vector_store %arg10[%c0_23, %c8_24], %51 {strides = array<i32>} : memref<8x32xf32, #tpu.memory_space<vmem>>, vector<8x8xf32>,
    %53 = arith.index_cast %4 : i32 to index
    %c16 = arith.constant 16 : index
    %54 = vector.load %arg9[%53, %c16] : memref<16x96xf32, #tpu.memory_space<vmem>>, vector<8x8xf32>
    %c0_25 = arith.constant 0 : index
    %c48 = arith.constant 48 : index
    %55 = vector.load %arg9[%c0_25, %c48] : memref<16x96xf32, #tpu.memory_space<vmem>>, vector<16x8xf32>
    %c0_26 = arith.constant 0 : index
    %c80 = arith.constant 80 : index
    %56 = vector.load %arg9[%c0_26, %c80] : memref<16x96xf32, #tpu.memory_space<vmem>>, vector<16x8xf32>
    %cst_27 = arith.constant dense<0.000000e+00> : vector<8x16xf32>
    %57 = tpu.matmul %54, %55, %cst_27 {dimension_numbers = #tpu.dot_dimension_numbers<[1], [1], [0], [0], [0, 0, 1, 0], [], []>} : vector<8x8xf32>, vector<16x8xf32>, vector<8x16xf32> -> vector<8x16xf32>
    %cst_28 = arith.constant dense<0xFF800000> : vector<8xf32>
    %58 = vector.multi_reduction <maximumf>, %57, %cst_28 [1] : vector<8x16xf32> to vector<8xf32>
    %59 = vector.shape_cast %58 : vector<8xf32> to vector<8x1xf32>
    %60 = vector.broadcast %59 : vector<8x1xf32> to vector<8x16xf32>
    %61 = arith.subf %57, %60 : vector<8x16xf32>
    %62 = math.exp %61 : vector<8x16xf32>
    %cst_29 = arith.constant dense<0.000000e+00> : vector<8xf32>
    %63 = vector.multi_reduction <add>, %62, %cst_29 [1] : vector<8x16xf32> to vector<8xf32>
    %64 = vector.shape_cast %63 : vector<8xf32> to vector<8x1xf32>
    %65 = tpu.reciprocal %64 {approx = true} : vector<8x1xf32> -> vector<8x1xf32>
    %66 = arith.mulf %64, %65 : vector<8x1xf32>
    %cst_30 = arith.constant 2.000000e+00 : f32
    %67 = vector.broadcast %cst_30 : f32 to vector<8x1xf32>
    %68 = arith.subf %67, %66 : vector<8x1xf32>
    %69 = arith.mulf %65, %68 : vector<8x1xf32>
    %70 = vector.broadcast %69 : vector<8x1xf32> to vector<8x16xf32>
    %71 = arith.mulf %62, %70 : vector<8x16xf32>
    %c0_31 = arith.constant 0 : index
    %c2 = arith.constant 2 : index
    %c0_32 = arith.constant 0 : index
    %c0_33 = arith.constant 0 : index
    %72 = vector.load %arg8[%c0_31, %c2, %c0_32, %c0_33] : memref<1x4x8x16xf32, #tpu.memory_space<vmem>>, vector<1x1x8x16xf32>
    %73 = vector.shape_cast %72 : vector<1x1x8x16xf32> to vector<8x16xf32>
    %74 = vector.shape_cast %71 : vector<8x16xf32> to vector<1x1x8x16xf32>
    tpu.vector_store %arg8[%c0_31, %c2, %c0_32, %c0_33], %74 {strides = array<i32>} : memref<1x4x8x16xf32, #tpu.memory_space<vmem>>, vector<1x1x8x16xf32>,
    %cst_34 = arith.constant dense<0.000000e+00> : vector<8x8xf32>
    %75 = tpu.matmul %71, %56, %cst_34 {dimension_numbers = #tpu.dot_dimension_numbers<[1], [0], [0], [1], [0, 0, 1, 1], [], []>} : vector<8x16xf32>, vector<16x8xf32>, vector<8x8xf32> -> vector<8x8xf32>
    %c0_35 = arith.constant 0 : index
    %c16_36 = arith.constant 16 : index
    %76 = vector.load %arg10[%c0_35, %c16_36] : memref<8x32xf32, #tpu.memory_space<vmem>>, vector<8x8xf32>
    tpu.vector_store %arg10[%c0_35, %c16_36], %75 {strides = array<i32>} : memref<8x32xf32, #tpu.memory_space<vmem>>, vector<8x8xf32>,
    %77 = arith.index_cast %4 : i32 to index
    %c24 = arith.constant 24 : index
    %78 = vector.load %arg9[%77, %c24] : memref<16x96xf32, #tpu.memory_space<vmem>>, vector<8x8xf32>
    %c0_37 = arith.constant 0 : index
    %c56 = arith.constant 56 : index
    %79 = vector.load %arg9[%c0_37, %c56] : memref<16x96xf32, #tpu.memory_space<vmem>>, vector<16x8xf32>
    %c0_38 = arith.constant 0 : index
    %c88 = arith.constant 88 : index
    %80 = vector.load %arg9[%c0_38, %c88] : memref<16x96xf32, #tpu.memory_space<vmem>>, vector<16x8xf32>
    %cst_39 = arith.constant dense<0.000000e+00> : vector<8x16xf32>
    %81 = tpu.matmul %78, %79, %cst_39 {dimension_numbers = #tpu.dot_dimension_numbers<[1], [1], [0], [0], [0, 0, 1, 0], [], []>} : vector<8x8xf32>, vector<16x8xf32>, vector<8x16xf32> -> vector<8x16xf32>
    %cst_40 = arith.constant dense<0xFF800000> : vector<8xf32>
    %82 = vector.multi_reduction <maximumf>, %81, %cst_40 [1] : vector<8x16xf32> to vector<8xf32>
    %83 = vector.shape_cast %82 : vector<8xf32> to vector<8x1xf32>
    %84 = vector.broadcast %83 : vector<8x1xf32> to vector<8x16xf32>
    %85 = arith.subf %81, %84 : vector<8x16xf32>
    %86 = math.exp %85 : vector<8x16xf32>
    %cst_41 = arith.constant dense<0.000000e+00> : vector<8xf32>
    %87 = vector.multi_reduction <add>, %86, %cst_41 [1] : vector<8x16xf32> to vector<8xf32>
    %88 = vector.shape_cast %87 : vector<8xf32> to vector<8x1xf32>
    %89 = tpu.reciprocal %88 {approx = true} : vector<8x1xf32> -> vector<8x1xf32>
    %90 = arith.mulf %88, %89 : vector<8x1xf32>
    %cst_42 = arith.constant 2.000000e+00 : f32
    %91 = vector.broadcast %cst_42 : f32 to vector<8x1xf32>
    %92 = arith.subf %91, %90 : vector<8x1xf32>
    %93 = arith.mulf %89, %92 : vector<8x1xf32>
    %94 = vector.broadcast %93 : vector<8x1xf32> to vector<8x16xf32>
    %95 = arith.mulf %86, %94 : vector<8x16xf32>
    %c0_43 = arith.constant 0 : index
    %c3 = arith.constant 3 : index
    %c0_44 = arith.constant 0 : index
    %c0_45 = arith.constant 0 : index
    %96 = vector.load %arg8[%c0_43, %c3, %c0_44, %c0_45] : memref<1x4x8x16xf32, #tpu.memory_space<vmem>>, vector<1x1x8x16xf32>
    %97 = vector.shape_cast %96 : vector<1x1x8x16xf32> to vector<8x16xf32>
    %98 = vector.shape_cast %95 : vector<8x16xf32> to vector<1x1x8x16xf32>
    tpu.vector_store %arg8[%c0_43, %c3, %c0_44, %c0_45], %98 {strides = array<i32>} : memref<1x4x8x16xf32, #tpu.memory_space<vmem>>, vector<1x1x8x16xf32>,
    %cst_46 = arith.constant dense<0.000000e+00> : vector<8x8xf32>
    %99 = tpu.matmul %95, %80, %cst_46 {dimension_numbers = #tpu.dot_dimension_numbers<[1], [0], [0], [1], [0, 0, 1, 1], [], []>} : vector<8x16xf32>, vector<16x8xf32>, vector<8x8xf32> -> vector<8x8xf32>
    %c0_47 = arith.constant 0 : index
    %c24_48 = arith.constant 24 : index
    %100 = vector.load %arg10[%c0_47, %c24_48] : memref<8x32xf32, #tpu.memory_space<vmem>>, vector<8x8xf32>
    tpu.vector_store %arg10[%c0_47, %c24_48], %99 {strides = array<i32>} : memref<8x32xf32, #tpu.memory_space<vmem>>, vector<8x8xf32>,
    %c0_49 = arith.constant 0 : index
    %c0_50 = arith.constant 0 : index
    %101 = vector.load %arg10[%c0_49, %c0_50] : memref<8x32xf32, #tpu.memory_space<vmem>>, vector<8x32xf32>
    %c0_51 = arith.constant 0 : index
    %c0_52 = arith.constant 0 : index
    %102 = vector.load %arg5[%c0_51, %c0_52] : memref<32x32xf32, #tpu.memory_space<vmem>>, vector<32x32xf32>
    %cst_53 = arith.constant dense<0.000000e+00> : vector<8x32xf32>
    %103 = tpu.matmul %101, %102, %cst_53 {dimension_numbers = #tpu.dot_dimension_numbers<[1], [0], [0], [1], [0, 0, 1, 1], [], []>} : vector<8x32xf32>, vector<32x32xf32>, vector<8x32xf32> -> vector<8x32xf32>
    %c0_54 = arith.constant 0 : index
    %c0_55 = arith.constant 0 : index
    %104 = vector.load %arg6[%c0_54, %c0_55] : memref<1x32xf32, #tpu.memory_space<vmem>>, vector<1x32xf32>
    %105 = vector.broadcast %104 : vector<1x32xf32> to vector<8x32xf32>
    %106 = arith.addf %103, %105 : vector<8x32xf32>
    %c0_56 = arith.constant 0 : index
    %c0_57 = arith.constant 0 : index
    %c0_58 = arith.constant 0 : index
    %107 = vector.load %arg7[%c0_56, %c0_57, %c0_58] : memref<1x8x32xf32, #tpu.memory_space<vmem>>, vector<1x8x32xf32>
    %108 = vector.shape_cast %107 : vector<1x8x32xf32> to vector<8x32xf32>
    %109 = vector.shape_cast %106 : vector<8x32xf32> to vector<1x8x32xf32>
    tpu.vector_store %arg7[%c0_56, %c0_57, %c0_58], %109 {strides = array<i32>} : memref<1x8x32xf32, #tpu.memory_space<vmem>>, vector<1x8x32xf32>,
    return
  }
  func.func @transform_0(%arg0: i32, %arg1: i32) -> (i32, i32, i32) {
    %c0_i32 = arith.constant 0 : i32
    %c0_i32_0 = arith.constant 0 : i32
    %c0_i32_1 = arith.constant 0 : i32
    return %arg0, %c0_i32, %c0_i32_0 : i32, i32, i32
  }
  func.func @transform_1(%arg0: i32, %arg1: i32) -> (i32, i32) {
    %c0_i32 = arith.constant 0 : i32
    %c0_i32_0 = arith.constant 0 : i32
    %c0_i32_1 = arith.constant 0 : i32
    return %c0_i32, %c0_i32_0 : i32, i32
  }
  func.func @transform_2(%arg0: i32, %arg1: i32) -> (i32, i32) {
    %c0_i32 = arith.constant 0 : i32
    %c0_i32_0 = arith.constant 0 : i32
    %c0_i32_1 = arith.constant 0 : i32
    return %c0_i32, %c0_i32_0 : i32, i32
  }
  func.func @transform_3(%arg0: i32, %arg1: i32) -> (i32, i32) {
    %c0_i32 = arith.constant 0 : i32
    %c0_i32_0 = arith.constant 0 : i32
    %c0_i32_1 = arith.constant 0 : i32
    return %c0_i32, %c0_i32_0 : i32, i32
  }
  func.func @transform_4(%arg0: i32, %arg1: i32) -> (i32, i32) {
    %c0_i32 = arith.constant 0 : i32
    %c0_i32_0 = arith.constant 0 : i32
    %c0_i32_1 = arith.constant 0 : i32
    return %c0_i32, %c0_i32_0 : i32, i32
  }
  func.func @transform_5(%arg0: i32, %arg1: i32) -> (i32, i32, i32) {
    %c0_i32 = arith.constant 0 : i32
    %c0_i32_0 = arith.constant 0 : i32
    return %arg0, %arg1, %c0_i32 : i32, i32, i32
  }
  func.func @transform_6(%arg0: i32, %arg1: i32) -> (i32, i32, i32, i32) {
    %c0_i32 = arith.constant 0 : i32
    %c0_i32_0 = arith.constant 0 : i32
    %c0_i32_1 = arith.constant 0 : i32
    return %arg0, %c0_i32, %arg1, %c0_i32_0 : i32, i32, i32, i32
  }
}

</mosaic_0001>

<llo_original>
// kernel: tpu_custom_call.1
$region0: #{tpu_custom_call.1}
  #allocation0 [shape = 'u32[]', space=smem, size = 0x4, offset = 0x4, fixed_abs, tag = 'smem constant byte address 0x4 - core index']
  #allocation1 [shape = 'u32[144,128]{1,0:T(1,128)}', space=vmem, size = 0x12000, scoped, tag = 'internal scratch']
  #allocation2 [shape = 'f32[16,96]{1,0:T(8,128)}', space=vmem, size = 0x2000, scoped, tag = 'scratch operand']
  #allocation3 [shape = 'f32[8,32]{1,0:T(8,128)}', space=vmem, size = 0x1000, scoped, tag = 'scratch operand']
  %s0 = inlined_call_operand.hbm [shape: f32[2,16,32], index: 0, kind: input, shape index: {}]
  %s1 = inlined_call_operand.hbm [shape: f32[32,96], index: 1, kind: input, shape index: {}]
  %s2 = inlined_call_operand.vmem [shape: f32[1,96], index: 2, kind: input, shape index: {}]
  %s3 = inlined_call_operand.hbm [shape: f32[32,32], index: 3, kind: input, shape index: {}]
  %s4 = inlined_call_operand.vmem [shape: f32[1,32], index: 4, kind: input, shape index: {}]
  %s5 = inlined_call_operand.hbm [shape: f32[2,16,32], index: 5, kind: output, shape index: {0}]
  %s6 = inlined_call_operand.hbm [shape: f32[2,4,16,16], index: 6, kind: output, shape index: {1}]
  %7 = xla_tuple %s5, %s6
  %s8 = sld [smem:[#allocation0]]
  $region77: #{tpu_custom_call.1} parent=0
    _
  %s10 = ssub.s32 1, %s8
  %s11 = scalar_select 0, %s10, %s8
  $region1: #{tpu_custom_call.1} parent=0
    #allocation4 [shape = 'u8[16384]{0}', space=vmem, size = 0x4000, scoped, tag = 'input window, operand 0']
    #allocation5 [shape = 's32[2]{0}', space=sflag, size = 0x8, scoped, tag = 'scoped memory for tpu_custom_call.1']
    #allocation6 [shape = 's32[2]{0}', space=sflag, size = 0x8, scoped, tag = 'scoped memory for tpu_custom_call.1']
    #allocation7 [shape = 'u8[16384]{0}', space=vmem, size = 0x4000, scoped, tag = 'input window, operand 1, single buffered']
    #allocation8 [shape = 's32[1]{0}', space=sflag, size = 0x4, scoped, tag = 'scoped memory for tpu_custom_call.1']
    #allocation9 [shape = 'u8[16384]{0}', space=vmem, size = 0x4000, scoped, tag = 'input window, operand 3, single buffered']
    #allocation10 [shape = 'u8[8192]{0}', space=vmem, size = 0x2000, scoped, tag = 'output window, operand 0']
    #allocation11 [shape = 'u8[32768]{0}', space=vmem, size = 0x8000, scoped, tag = 'output window, operand 1']
    #allocation12 [shape = 's32[2]{0}', space=sflag, size = 0x8, scoped, tag = 'scoped memory for tpu_custom_call.1']
    %12 = vsyncpa [#allocation5], 0
    %s13 = scalar_lea.sflag [#allocation5], 1
    %14 = vsyncpa %s13, 0
    %15 = vsyncpa [#allocation8], 0
    %16 = vsyncpa [#allocation6], 0
    %s17 = scalar_lea.sflag [#allocation6], 1
    %18 = vsyncpa %s17, 0
    %19 = vsyncpa [#allocation12], 0
    %s20 = scalar_lea.sflag [#allocation12], 1
    %21 = vsyncpa %s20, 0
    loop: start=0, step=1, limit=6
    $region2: #{tpu_custom_call.1} parent=1 // loop_pre_header
      _
    $region3: #{tpu_custom_call.1} parent=1 // loop_header
      %s23 = sphi 0, %s27
      %p24 = scmp.ge.s32.totalorder %s23, 6
      %s30 = sphi 0, %s42
      %s31 = sphi 0, %s38
      %s32 = sphi 0, %s30
      %s33 = sphi 0, %s31
      %s34 = sphi 0, %s32
      %s35 = sphi 0, %s33
      %s45 = sphi 0, %s47
      %s48 = sphi 0, %s45
      %s49 = sphi 0, %s48
      %s65 = sphi 0, %s49
      %s69 = sphi 0, %s69
      %s71 = sphi 0, %s69
      %s72 = sphi 0, %s71
      %s86 = sphi 0, %s72
      %s90 = sphi 0, %s90
      %s92 = sphi 0, %s90
      %s93 = sphi 0, %s92
      %s107 = sphi 0, %s93
      %s111 = sphi 0, %s111
      %s113 = sphi 0, %s111
      %s114 = sphi 0, %s113
      %s128 = sphi 0, %s114
      %s132 = sphi 0, %s132
      %s134 = sphi 0, %s132
      %s135 = sphi 0, %s134
      %s149 = sphi 0, %s135
      %s157 = sphi 0, %s159
      %s160 = sphi 0, %s157
      %s161 = sphi 0, %s160
      %s177 = sphi 0, %s161
      %s185 = sphi 0, %s187
      %s188 = sphi 0, %s185
      %s189 = sphi 0, %s188
      %s205 = sphi 0, %s189
    $region4: #{tpu_custom_call.1} parent=1 // loop_header_branch
      %26 = sbr.rel (%p24) target = $region8
    $region5: #{tpu_custom_call.1} parent=1 // loop_body
      %s28 = ssub.s32 %s23, 1
      %s29 = ssub.s32 %s23, 2
      %s36 = sadd.s32 1, %s31
      %p37 = scmp.ge.s32.totalorder %s36, 2
      %s38 = scalar_select %p37, 0, %s36
      %s39 = sadd.s32 1, %s30
      %s40 = scalar_select %p37, %s39, %s30
      %p41 = scmp.ge.s32.totalorder %s40, 2
      %s42 = scalar_select %p41, 0, %s40
      %s43 = ssub.s32 %s30, %s42
      %p44 = scmp.eq.s32.totalorder %s43, 0
      %s46 = sadd.s32 %s45, 1
      %s47 = scalar_select %p44, %s45, %s46
      %p50 = pneg %p44
      %p51 = scmp.eq.s32.totalorder %s23, 3
      %p52 = por %p50, %p51
      %p53 = scmp.ne.s32.totalorder %s45, %s48
      %p54 = scmp.eq.s32.totalorder %s23, 0
      %p55 = por %p53, %p54
      %p56 = scmp.ne.s32.totalorder %s45, %s48
      %p57 = scmp.eq.s32.totalorder %s28, 3
      %p58 = por %p56, %p57
      %p59 = scmp.ne.s32.totalorder %s48, %s49
      %p60 = scmp.eq.s32.totalorder %s28, 0
      %p61 = por %p59, %p60
      %p62 = scmp.ne.s32.totalorder %s48, %s49
      %p63 = scmp.eq.s32.totalorder %s29, 3
      %p64 = por %p62, %p63
      %p66 = scmp.ne.s32.totalorder %s49, %s65
      %p67 = scmp.eq.s32.totalorder %s29, 0
      %p68 = por %p66, %p67
      %s70 = sadd.s32 %s69, 1
      %p73 = scmp.eq.s32.totalorder %s23, 3
      %p74 = scmp.ne.s32.totalorder %s69, %s71
      %p75 = scmp.eq.s32.totalorder %s23, 0
      %p76 = por %p74, %p75
      %p77 = scmp.ne.s32.totalorder %s69, %s71
      %p78 = scmp.eq.s32.totalorder %s28, 3
      %p79 = por %p77, %p78
      %p80 = scmp.ne.s32.totalorder %s71, %s72
      %p81 = scmp.eq.s32.totalorder %s28, 0
      %p82 = por %p80, %p81
      %p83 = scmp.ne.s32.totalorder %s71, %s72
      %p84 = scmp.eq.s32.totalorder %s29, 3
      %p85 = por %p83, %p84
      %p87 = scmp.ne.s32.totalorder %s72, %s86
      %p88 = scmp.eq.s32.totalorder %s29, 0
      %p89 = por %p87, %p88
      %s91 = sadd.s32 %s90, 1
      %p94 = scmp.eq.s32.totalorder %s23, 3
      %p95 = scmp.ne.s32.totalorder %s90, %s92
      %p96 = scmp.eq.s32.totalorder %s23, 0
      %p97 = por %p95, %p96
      %p98 = scmp.ne.s32.totalorder %s90, %s92
      %p99 = scmp.eq.s32.totalorder %s28, 3
      %p100 = por %p98, %p99
      %p101 = scmp.ne.s32.totalorder %s92, %s93
      %p102 = scmp.eq.s32.totalorder %s28, 0
      %p103 = por %p101, %p102
      %p104 = scmp.ne.s32.totalorder %s92, %s93
      %p105 = scmp.eq.s32.totalorder %s29, 3
      %p106 = por %p104, %p105
      %p108 = scmp.ne.s32.totalorder %s93, %s107
      %p109 = scmp.eq.s32.totalorder %s29, 0
      %p110 = por %p108, %p109
      %s112 = sadd.s32 %s111, 1
      %p115 = scmp.eq.s32.totalorder %s23, 3
      %p116 = scmp.ne.s32.totalorder %s111, %s113
      %p117 = scmp.eq.s32.totalorder %s23, 0
      %p118 = por %p116, %p117
      %p119 = scmp.ne.s32.totalorder %s111, %s113
      %p120 = scmp.eq.s32.totalorder %s28, 3
      %p121 = por %p119, %p120
      %p122 = scmp.ne.s32.totalorder %s113, %s114
      %p123 = scmp.eq.s32.totalorder %s28, 0
      %p124 = por %p122, %p123
      %p125 = scmp.ne.s32.totalorder %s113, %s114
      %p126 = scmp.eq.s32.totalorder %s29, 3
      %p127 = por %p125, %p126
      %p129 = scmp.ne.s32.totalorder %s114, %s128
      %p130 = scmp.eq.s32.totalorder %s29, 0
      %p131 = por %p129, %p130
      %s133 = sadd.s32 %s132, 1
      %p136 = scmp.eq.s32.totalorder %s23, 3
      %p137 = scmp.ne.s32.totalorder %s132, %s134
      %p138 = scmp.eq.s32.totalorder %s23, 0
      %p139 = por %p137, %p138
      %p140 = scmp.ne.s32.totalorder %s132, %s134
      %p141 = scmp.eq.s32.totalorder %s28, 3
      %p142 = por %p140, %p141
      %p143 = scmp.ne.s32.totalorder %s134, %s135
      %p144 = scmp.eq.s32.totalorder %s28, 0
      %p145 = por %p143, %p144
      %p146 = scmp.ne.s32.totalorder %s134, %s135
      %p147 = scmp.eq.s32.totalorder %s29, 3
      %p148 = por %p146, %p147
      %p150 = scmp.ne.s32.totalorder %s135, %s149
      %p151 = scmp.eq.s32.totalorder %s29, 0
      %p152 = por %p150, %p151
      %s153 = ssub.s32 %s30, %s42
      %s154 = ssub.s32 %s31, %s38
      %s155 = sor.u32 %s153, %s154
      %p156 = scmp.eq.s32.totalorder %s155, 0
      %s158 = sadd.s32 %s157, 1
      %s159 = scalar_select %p156, %s157, %s158
      %p162 = pneg %p156
      %p163 = scmp.eq.s32.totalorder %s23, 3
      %p164 = por %p162, %p163
      %p165 = scmp.ne.s32.totalorder %s157, %s160
      %p166 = scmp.eq.s32.totalorder %s23, 0
      %p167 = por %p165, %p166
      %p168 = scmp.ne.s32.totalorder %s157, %s160
      %p169 = scmp.eq.s32.totalorder %s28, 3
      %p170 = por %p168, %p169
      %p171 = scmp.ne.s32.totalorder %s160, %s161
      %p172 = scmp.eq.s32.totalorder %s28, 0
      %p173 = por %p171, %p172
      %p174 = scmp.ne.s32.totalorder %s160, %s161
      %p175 = scmp.eq.s32.totalorder %s29, 3
      %p176 = por %p174, %p175
      %p178 = scmp.ne.s32.totalorder %s161, %s177
      %p179 = scmp.eq.s32.totalorder %s29, 0
      %p180 = por %p178, %p179
      %s181 = ssub.s32 %s30, %s42
      %s182 = ssub.s32 %s31, %s38
      %s183 = sor.u32 %s181, %s182
      %p184 = scmp.eq.s32.totalorder %s183, 0
      %s186 = sadd.s32 %s185, 1
      %s187 = scalar_select %p184, %s185, %s186
      %p190 = pneg %p184
      %p191 = scmp.eq.s32.totalorder %s23, 3
      %p192 = por %p190, %p191
      %p193 = scmp.ne.s32.totalorder %s185, %s188
      %p194 = scmp.eq.s32.totalorder %s23, 0
      %p195 = por %p193, %p194
      %p196 = scmp.ne.s32.totalorder %s185, %s188
      %p197 = scmp.eq.s32.totalorder %s28, 3
      %p198 = por %p196, %p197
      %p199 = scmp.ne.s32.totalorder %s188, %s189
      %p200 = scmp.eq.s32.totalorder %s28, 0
      %p201 = por %p199, %p200
      %p202 = scmp.ne.s32.totalorder %s188, %s189
      %p203 = scmp.eq.s32.totalorder %s29, 3
      %p204 = por %p202, %p203
      %p206 = scmp.ne.s32.totalorder %s189, %s205
      %p207 = scmp.eq.s32.totalorder %s29, 0
      %p208 = por %p206, %p207
      %p209 = scmp.le.s32.totalorder 1, %s23
      %p210 = scmp.lt.s32.totalorder %s23, 5
      %p211 = pnand %p209, %p210
      %p212 = pneg %p211
      // Predicated region
      $region9: #{tpu_custom_call.1} parent=5 // pred_check
        _
      $region10: #{tpu_custom_call.1} parent=5 // pred_check_branch
        %214 = sbr.rel (%p211) target = $region12
      $region11: #{tpu_custom_call.1} parent=5 // pred_region
        %s215 = ssub.s32 %s23, 1
        // Predicated region
        $region13: #{tpu_custom_call.1} parent=11 // pred_check
          %p216 = pneg %p82
        $region14: #{tpu_custom_call.1} parent=11 // pred_check_branch
          %218 = sbr.rel (%p216) target = $region16
        $region15: #{tpu_custom_call.1} parent=11 // pred_region
          %s220 = ssub.s32 512, 512
          %221 = vsyncadd [#allocation8], %s220
          %s222 = sshll.u32 [#allocation7], 4
          %s223 = int_to_ptr.vmem [resolvable:$true] %s222
          %228 = dma.hbm_to_vmem [thread:$0]  %s1, 512, %s223, [#allocation8], 128, 128, 8
        $region16: #{tpu_custom_call.1} parent=11 // pred_fallthru
          _
        // Predicated region
        $region17: #{tpu_custom_call.1} parent=11 // pred_check
          %p229 = pneg %p103
        $region18: #{tpu_custom_call.1} parent=11 // pred_check_branch
          %231 = sbr.rel (%p229) target = $region20
        $region19: #{tpu_custom_call.1} parent=11 // pred_region
          _
        $region20: #{tpu_custom_call.1} parent=11 // pred_fallthru
          _
        // Predicated region
        $region21: #{tpu_custom_call.1} parent=11 // pred_check
          %p232 = pneg %p124
        $region22: #{tpu_custom_call.1} parent=11 // pred_check_branch
          %234 = sbr.rel (%p232) target = $region24
        $region23: #{tpu_custom_call.1} parent=11 // pred_region
          %s236 = ssub.s32 512, 512
          %237 = vsyncadd [#allocation8], %s236
          %s238 = sshll.u32 [#allocation9], 4
          %s239 = int_to_ptr.vmem [resolvable:$true] %s238
          %244 = dma.hbm_to_vmem [thread:$0]  %s3, 512, %s239, [#allocation8], 128, 128, 8
        $region24: #{tpu_custom_call.1} parent=11 // pred_fallthru
          _
        // Predicated region
        $region25: #{tpu_custom_call.1} parent=11 // pred_check
          %p245 = pneg %p145
        $region26: #{tpu_custom_call.1} parent=11 // pred_check_branch
          %247 = sbr.rel (%p245) target = $region28
        $region27: #{tpu_custom_call.1} parent=11 // pred_region
          _
        $region28: #{tpu_custom_call.1} parent=11 // pred_fallthru
          _
      $region12: #{tpu_custom_call.1} parent=5 // pred_fallthru
        _
      %p248 = scmp.lt.s32.totalorder %s23, 4
      // Predicated region
      $region29: #{tpu_custom_call.1} parent=5 // pred_check
        %p249 = pneg %p248
      $region30: #{tpu_custom_call.1} parent=5 // pred_check_branch
        %251 = sbr.rel (%p249) target = $region32
      $region31: #{tpu_custom_call.1} parent=5 // pred_region
        // Predicated region
        $region33: #{tpu_custom_call.1} parent=31 // pred_check
          %p252 = pneg %p55
        $region34: #{tpu_custom_call.1} parent=31 // pred_check_branch
          %254 = sbr.rel (%p252) target = $region36
        $region35: #{tpu_custom_call.1} parent=31 // pred_region
          %s255 = sand.u32 %s45, 1
          %s256 = scalar_lea.sflag [#allocation5], %s255
          %s257 = sand.u32 %s45, 1
          %s258 = smul.addr %s257, 16
          %s259 = scalar_lea.vmem [#allocation4], %s258
          %s261 = ssub.s32 256, 256
          %262 = vsyncadd %s256, %s261
          %s263 = smul.addr %s30, 2
          %s264 = smul.addr %s263, 128
          %s265 = scalar_lea.hbm %s0, %s264
          %s266 = sshll.u32 %s259, 4
          %s267 = int_to_ptr.vmem [resolvable:$true] %s266
          %272 = dma.hbm_to_vmem [thread:$0]  %s265, 256, %s267, %s256, 128, 128, 8
        $region36: #{tpu_custom_call.1} parent=31 // pred_fallthru
          _
      $region32: #{tpu_custom_call.1} parent=5 // pred_fallthru
        _
      %p273 = scmp.le.s32.totalorder 1, %s23
      %p274 = scmp.lt.s32.totalorder %s23, 5
      %p275 = pnand %p273, %p274
      %p276 = pneg %p275
      // Predicated region
      $region37: #{tpu_custom_call.1} parent=5 // pred_check
        _
      $region38: #{tpu_custom_call.1} parent=5 // pred_check_branch
        %278 = sbr.rel (%p275) target = $region40
      $region39: #{tpu_custom_call.1} parent=5 // pred_region
        %s279 = ssub.s32 %s23, 1
        %s280 = sand.u32 %s48, 1
        %s281 = scalar_lea.sflag [#allocation5], %s280
        %s282 = sand.u32 %s48, 1
        %s283 = smul.addr %s282, 16
        %s284 = scalar_lea.vmem [#allocation4], %s283
        // Predicated region
        $region41: #{tpu_custom_call.1} parent=39 // pred_check
          %p285 = pneg %p61
        $region42: #{tpu_custom_call.1} parent=39 // pred_check_branch
          %287 = sbr.rel (%p285) target = $region44
        $region43: #{tpu_custom_call.1} parent=39 // pred_region
          %288 = dma.done %s281, 256
        $region44: #{tpu_custom_call.1} parent=39 // pred_fallthru
          _
        // Predicated region
        $region45: #{tpu_custom_call.1} parent=39 // pred_check
          %p289 = pneg %p82
        $region46: #{tpu_custom_call.1} parent=39 // pred_check_branch
          %291 = sbr.rel (%p289) target = $region48
        $region47: #{tpu_custom_call.1} parent=39 // pred_region
          %292 = dma.done [#allocation8], 512
        $region48: #{tpu_custom_call.1} parent=39 // pred_fallthru
          _
        // Predicated region
        $region49: #{tpu_custom_call.1} parent=39 // pred_check
          %p293 = pneg %p124
        $region50: #{tpu_custom_call.1} parent=39 // pred_check_branch
          %295 = sbr.rel (%p293) target = $region52
        $region51: #{tpu_custom_call.1} parent=39 // pred_region
          %296 = dma.done [#allocation8], 512
        $region52: #{tpu_custom_call.1} parent=39 // pred_fallthru
          _
        %s297 = sand.u32 %s48, 1
        %s298 = scalar_lea.sflag [#allocation5], %s297
        %s299 = sand.u32 %s48, 1
        %s300 = smul.addr %s299, 16
        %s301 = scalar_lea.vmem [#allocation4], %s300
        %p302 = pneg %p61
        %p303 = pneg %p58
        %p304 = pneg %p82
        %p305 = pneg %p79
        %p306 = pneg %p103
        %p307 = pneg %p100
        %p308 = pneg %p124
        %p309 = pneg %p121
        %p310 = pneg %p145
        %p311 = pneg %p142
        %p312 = pneg %p173
        %p313 = pneg %p170
        %s314 = sand.u32 %s160, 1
        %s315 = scalar_lea.sflag [#allocation6], %s314
        %s316 = sand.u32 %s160, 1
        %s317 = smul.addr %s316, 8
        %s318 = scalar_lea.vmem [#allocation10], %s317
        %p319 = pneg %p201
        %p320 = pneg %p198
        %s321 = sand.u32 %s188, 1
        %s322 = scalar_lea.sflag [#allocation12], %s321
        %s323 = sand.u32 %s188, 1
        %s324 = smul.addr %s323, 32
        %s325 = scalar_lea.vmem [#allocation11], %s324
        %p326 = scmp.eq.s32.totalorder %s33, 0
        // Predicated region
        $region53: #{tpu_custom_call.1} parent=39 // pred_check
          %p327 = pneg %p326
        $region54: #{tpu_custom_call.1} parent=39 // pred_check_branch
          %329 = sbr.rel (%p327) target = $region56
        $region55: #{tpu_custom_call.1} parent=39 // pred_region
          %v330 = vld [vmem:[%s284] sm:$0xff]
          %v331 = vld [vmem:[%s284 + $0x8] sm:$0xff]
          %v332 = vld [vmem:[#allocation7] sm:$0xff]
          %v333 = vld [vmem:[#allocation7 + $0x8] sm:$0xff]
          %v334 = vld [vmem:[#allocation7 + $0x10] sm:$0xff]
          %v335 = vld [vmem:[#allocation7 + $0x18] sm:$0xff]
          %v336 = vld [vmem:[%s2] sm:$0x1]
          %v338 = vlaneseq
          %v339 = vshrl.u32 %v338, 7
          %v340 = vsub.s32 0, %v339
          %v341 = vrot.slane %v336, %v340
          %vm343 = vcmask 261120
          %v345 = vsel %vm343, %v330, 0
          %v348 = vsel %vm343, %v331, 0
          %350 = vmatprep.subr.mxu0 0.0
          %351 = vmatpush1.msra.mxu0 %v332
          %352 = vmatprep.subr.mxu0 0.0
          %353 = vmatpush1.msra.mxu0 %v333
          %354 = vmatprep.subr.mxu0 0.0
          %355 = vmatpush1.msra.mxu0 %v334
          %356 = vmatprep.subr.mxu0 0.0
          %357 = vmatpush1.msra.mxu0 %v335
          %358 = vmatprep.subr.mxu0 0.0
          %359 = vmatpush1.msra.mxu0 0.0
          %360 = vmatprep.subr.mxu0 0.0
          %361 = vmatpush1.msra.mxu0 0.0
          %362 = vmatprep.subr.mxu0 0.0
          %363 = vmatpush1.msra.mxu0 0.0
          %364 = vmatprep.subr.mxu0 0.0
          %365 = vmatpush1.msra.mxu0 0.0
          %366 = vmatprep.subr.mxu0 0.0
          %367 = vmatpush1.msra.mxu0 0.0
          %368 = vmatprep.subr.mxu0 0.0
          %369 = vmatpush1.msra.mxu0 0.0
          %370 = vmatprep.subr.mxu0 0.0
          %371 = vmatpush1.msra.mxu0 0.0
          %372 = vmatprep.subr.mxu0 0.0
          %373 = vmatpush1.msra.mxu0 0.0
          %374 = vmatprep.subr.mxu0 0.0
          %375 = vmatpush1.msra.mxu0 0.0
          %376 = vmatprep.subr.mxu0 0.0
          %377 = vmatpush1.msra.mxu0 0.0
          %378 = vmatprep.subr.mxu0 0.0
          %379 = vmatpush1.msra.mxu0 0.0
          %380 = vmatprep.subr.mxu0 0.0
          %381 = vmatpush1.msra.mxu0 0.0
          %382 = vmatprep.subr.mxu0 0.0
          %383 = vmatpush1.msra.mxu0 0.0
          %384 = vmatprep.subr.mxu0 0.0
          %385 = vmatpush1.msra.mxu0 0.0
          %386 = vmatprep.subr.mxu0 0.0
          %387 = vmatpush1.msra.mxu0 0.0
          %388 = vmatprep.subr.mxu0 0.0
          %389 = vmatpush1.msra.mxu0 0.0
          %390 = vmatprep.subr.mxu0 0.0
          %391 = vmatpush1.msra.mxu0 0.0
          %392 = vmatprep.subr.mxu0 0.0
          %393 = vmatpush1.msra.mxu0 0.0
          %394 = vmatprep.subr.mxu0 0.0
          %395 = vmatpush1.msra.mxu0 0.0
          %396 = vmatprep.subr.mxu0 0.0
          %397 = vmatpush1.msra.mxu0 0.0
          %398 = vmatprep.subr.mxu0 0.0
          %399 = vmatpush1.msra.mxu0 0.0
          %400 = vmatprep.subr.mxu0 0.0
          %401 = vmatpush1.msra.mxu0 0.0
          %402 = vmatprep.subr.mxu0 0.0
          %403 = vmatpush1.msra.mxu0 0.0
          %404 = vmatprep.subr.mxu0 0.0
          %405 = vmatpush1.msra.mxu0 0.0
          %406 = vmatprep.subr.mxu0 0.0
          %407 = vmatpush1.msra.mxu0 0.0
          %408 = vmatprep.subr.mxu0 0.0
          %409 = vmatpush1.msra.mxu0 0.0
          %410 = vmatprep.subr.mxu0 0.0
          %411 = vmatpush1.msra.mxu0 0.0
          %412 = vmatprep.subr.mxu0 0.0
          %413 = vmatpush1.msra.mxu0 0.0
          %414 = vmatprep.mubr.f32.mxu0 0.0
          %415 = vmatmul.mubr.f32.gmra.mrb[0].mxu0 %v345
          %v416 = vpop.f32.mrb[0].mxu0
          %v417 = vadd.f32 %v341, %v416
          %v418 = vpop.f32.mrb[0].mxu0
          %419 = vmatprep.mubr.f32.mxu0 0.0
          %420 = vmatmul.mubr.f32.gmra.mrb[0].mxu0 %v348
          %v421 = vpop.f32.mrb[0].mxu0
          %v422 = vadd.f32 %v341, %v421
          %v423 = vpop.f32.mrb[0].mxu0
          %424 = vdwg.mxu0
          %vm425 = vcmask 785408
          %426 = vst.msk [vmem:[#allocation2] sm:$0xff] %vm425, %v417
          %427 = vst.msk [vmem:[#allocation2 + $0x8] sm:$0xff] %vm425, %v422
        $region56: #{tpu_custom_call.1} parent=39 // pred_fallthru
          _
        %s428 = smul.u32 %s33, 8
        %s429 = scalar_lea.vmem [#allocation2], %s428
        %v430 = vld [vmem:[%s429] sm:$0xff]
        %v431 = vld [vmem:[#allocation2] sm:$0xff]
        %v432 = vld [vmem:[#allocation2 + $0x8] sm:$0xff]
        %435 = vrot.lane.b32.xlu0 %v431, 96
        %v436 = vpop.permute.xlu0 %435
        %437 = vrot.lane.b32.xlu0 %v432, 96
        %v438 = vpop.permute.xlu0 %437
        %vm439 = vcmask 64512
        %v441 = vsel %vm439, %v430, 0
        %v443 = vsel %vm439, %v436, 0
        %v445 = vsel %vm439, %v438, 0
        %447 = vmatprep.subr.mxu0 0.0
        %448 = vmatpush1.xpose.msra.mxu0 %v443
        %449 = vmatprep.subr.mxu0 0.0
        %450 = vmatpush1.xpose.msra.mxu0 %v445
        %451 = vmatprep.subr.mxu0 0.0
        %452 = vmatpush1.xpose.msra.mxu0 0.0
        %453 = vmatprep.subr.mxu0 0.0
        %454 = vmatpush1.xpose.msra.mxu0 0.0
        %455 = vmatprep.subr.mxu0 0.0
        %456 = vmatpush1.xpose.msra.mxu0 0.0
        %457 = vmatprep.subr.mxu0 0.0
        %458 = vmatpush1.xpose.msra.mxu0 0.0
        %459 = vmatprep.subr.mxu0 0.0
        %460 = vmatpush1.xpose.msra.mxu0 0.0
        %461 = vmatprep.subr.mxu0 0.0
        %462 = vmatpush1.xpose.msra.mxu0 0.0
        %463 = vmatprep.subr.mxu0 0.0
        %464 = vmatpush1.xpose.msra.mxu0 0.0
        %465 = vmatprep.subr.mxu0 0.0
        %466 = vmatpush1.xpose.msra.mxu0 0.0
        %467 = vmatprep.subr.mxu0 0.0
        %468 = vmatpush1.xpose.msra.mxu0 0.0
        %469 = vmatprep.subr.mxu0 0.0
        %470 = vmatpush1.xpose.msra.mxu0 0.0
        %471 = vmatprep.subr.mxu0 0.0
        %472 = vmatpush1.xpose.msra.mxu0 0.0
        %473 = vmatprep.subr.mxu0 0.0
        %474 = vmatpush1.xpose.msra.mxu0 0.0
        %475 = vmatprep.subr.mxu0 0.0
        %476 = vmatpush1.xpose.msra.mxu0 0.0
        %477 = vmatprep.subr.mxu0 0.0
        %478 = vmatpush1.xpose.msra.mxu0 0.0
        %479 = vmatprep.subr.mxu0 0.0
        %480 = vmatpush1.xpose.msra.mxu0 0.0
        %481 = vmatprep.subr.mxu0 0.0
        %482 = vmatpush1.xpose.msra.mxu0 0.0
        %483 = vmatprep.subr.mxu0 0.0
        %484 = vmatpush1.xpose.msra.mxu0 0.0
        %485 = vmatprep.subr.mxu0 0.0
        %486 = vmatpush1.xpose.msra.mxu0 0.0
        %487 = vmatprep.subr.mxu0 0.0
        %488 = vmatpush1.xpose.msra.mxu0 0.0
        %489 = vmatprep.subr.mxu0 0.0
        %490 = vmatpush1.xpose.msra.mxu0 0.0
        %491 = vmatprep.subr.mxu0 0.0
        %492 = vmatpush1.xpose.msra.mxu0 0.0
        %493 = vmatprep.subr.mxu0 0.0
        %494 = vmatpush1.xpose.msra.mxu0 0.0
        %495 = vmatprep.subr.mxu0 0.0
        %496 = vmatpush1.xpose.msra.mxu0 0.0
        %497 = vmatprep.subr.mxu0 0.0
        %498 = vmatpush1.xpose.msra.mxu0 0.0
        %499 = vmatprep.subr.mxu0 0.0
        %500 = vmatpush1.xpose.msra.mxu0 0.0
        %501 = vmatprep.subr.mxu0 0.0
        %502 = vmatpush1.xpose.msra.mxu0 0.0
        %503 = vmatprep.subr.mxu0 0.0
        %504 = vmatpush1.xpose.msra.mxu0 0.0
        %505 = vmatprep.subr.mxu0 0.0
        %506 = vmatpush1.xpose.msra.mxu0 0.0
        %507 = vmatprep.subr.mxu0 0.0
        %508 = vmatpush1.xpose.msra.mxu0 0.0
        %509 = vmatprep.subr.mxu0 0.0
        %510 = vmatpush1.xpose.msra.mxu0 0.0
        %511 = vmatprep.mubr.f32.mxu0 0.0
        %512 = vmatmul.mubr.f32.gmra.mrb[0].mxu0 %v441
        %v513 = vpop.f32.mrb[0].mxu0
        %v514 = vadd.f32 0.0, %v513
        %v515 = vpop.f32.mrb[0].mxu0
        %516 = vdwg.mxu0
        %vm517 = vcmask 130048
        %v518 = vsel %vm517, %v514, -inf
        %519 = vmax.xlane.f32.xlu0 %v518
        %v520 = vpop.xlane.xlu0 %519
        %v521 = vsub.f32 %v514, %v520
        %v522 = vmul.f32 %v521, 1.442695
        %v523 = vpow.pop %v522
        %v524 = vsel %vm517, %v523, 0.0
        %525 = vadd.xlane.f32.xlu0 %v524
        %v526 = vpop.xlane.xlu0 %525
        %v527 = vrcp.pop %v526
        %v528 = vmul.f32 %v526, %v527
        %v529 = vsub.f32 2.0, %v528
        %v530 = vmul.f32 %v527, %v529
        %v531 = vmul.f32 %v523, %v530
        %532 = vst.msk [vmem:[%s325] sm:$0xff] %vm517, %v531
        %533 = vrot.lane.b32.xlu0 %v431, 64
        %v534 = vpop.permute.xlu0 %533
        %535 = vrot.lane.b32.xlu0 %v432, 64
        %v536 = vpop.permute.xlu0 %535
        %v540 = vsel %vm517, %v531, 0
        %542 = vmatprep.subr.mxu0 0.0
        %543 = vmatpush1.msra.mxu0 %v534
        %544 = vmatprep.subr.mxu0 0.0
        %545 = vmatpush1.msra.mxu0 %v536
        %546 = vmatprep.subr.mxu0 0.0
        %547 = vmatpush1.msra.mxu0 0.0
        %548 = vmatprep.subr.mxu0 0.0
        %549 = vmatpush1.msra.mxu0 0.0
        %550 = vmatprep.subr.mxu0 0.0
        %551 = vmatpush1.msra.mxu0 0.0
        %552 = vmatprep.subr.mxu0 0.0
        %553 = vmatpush1.msra.mxu0 0.0
        %554 = vmatprep.subr.mxu0 0.0
        %555 = vmatpush1.msra.mxu0 0.0
        %556 = vmatprep.subr.mxu0 0.0
        %557 = vmatpush1.msra.mxu0 0.0
        %558 = vmatprep.subr.mxu0 0.0
        %559 = vmatpush1.msra.mxu0 0.0
        %560 = vmatprep.subr.mxu0 0.0
        %561 = vmatpush1.msra.mxu0 0.0
        %562 = vmatprep.subr.mxu0 0.0
        %563 = vmatpush1.msra.mxu0 0.0
        %564 = vmatprep.subr.mxu0 0.0
        %565 = vmatpush1.msra.mxu0 0.0
        %566 = vmatprep.subr.mxu0 0.0
        %567 = vmatpush1.msra.mxu0 0.0
        %568 = vmatprep.subr.mxu0 0.0
        %569 = vmatpush1.msra.mxu0 0.0
        %570 = vmatprep.subr.mxu0 0.0
        %571 = vmatpush1.msra.mxu0 0.0
        %572 = vmatprep.subr.mxu0 0.0
        %573 = vmatpush1.msra.mxu0 0.0
        %574 = vmatprep.subr.mxu0 0.0
        %575 = vmatpush1.msra.mxu0 0.0
        %576 = vmatprep.subr.mxu0 0.0
        %577 = vmatpush1.msra.mxu0 0.0
        %578 = vmatprep.subr.mxu0 0.0
        %579 = vmatpush1.msra.mxu0 0.0
        %580 = vmatprep.subr.mxu0 0.0
        %581 = vmatpush1.msra.mxu0 0.0
        %582 = vmatprep.subr.mxu0 0.0
        %583 = vmatpush1.msra.mxu0 0.0
        %584 = vmatprep.subr.mxu0 0.0
        %585 = vmatpush1.msra.mxu0 0.0
        %586 = vmatprep.subr.mxu0 0.0
        %587 = vmatpush1.msra.mxu0 0.0
        %588 = vmatprep.subr.mxu0 0.0
        %589 = vmatpush1.msra.mxu0 0.0
        %590 = vmatprep.subr.mxu0 0.0
        %591 = vmatpush1.msra.mxu0 0.0
        %592 = vmatprep.subr.mxu0 0.0
        %593 = vmatpush1.msra.mxu0 0.0
        %594 = vmatprep.subr.mxu0 0.0
        %595 = vmatpush1.msra.mxu0 0.0
        %596 = vmatprep.subr.mxu0 0.0
        %597 = vmatpush1.msra.mxu0 0.0
        %598 = vmatprep.subr.mxu0 0.0
        %599 = vmatpush1.msra.mxu0 0.0
        %600 = vmatprep.subr.mxu0 0.0
        %601 = vmatpush1.msra.mxu0 0.0
        %602 = vmatprep.subr.mxu0 0.0
        %603 = vmatpush1.msra.mxu0 0.0
        %604 = vmatprep.subr.mxu0 0.0
        %605 = vmatpush1.msra.mxu0 0.0
        %606 = vmatprep.mubr.f32.mxu0 0.0
        %607 = vmatmul.mubr.f32.gmra.mrb[0].mxu0 %v540
        %v608 = vpop.f32.mrb[0].mxu0
        %v609 = vadd.f32 0.0, %v608
        %v610 = vpop.f32.mrb[0].mxu0
        %611 = vdwg.mxu0
        %612 = vst.msk [vmem:[#allocation3] sm:$0xff] %vm439, %v609
        %v613 = vld [vmem:[%s429] sm:$0xff]
        %v614 = vld [vmem:[#allocation2] sm:$0xff]
        %v615 = vld [vmem:[#allocation2 + $0x8] sm:$0xff]
        %617 = vrot.lane.b32.xlu0 %v613, 120
        %v618 = vpop.permute.xlu0 %617
        %621 = vrot.lane.b32.xlu0 %v614, 88
        %v622 = vpop.permute.xlu0 %621
        %623 = vrot.lane.b32.xlu0 %v615, 88
        %v624 = vpop.permute.xlu0 %623
        %v625 = vsel %vm439, %v618, 0
        %v627 = vsel %vm439, %v622, 0
        %v629 = vsel %vm439, %v624, 0
        %631 = vmatprep.subr.mxu0 0.0
        %632 = vmatpush1.xpose.msra.mxu0 %v627
        %633 = vmatprep.subr.mxu0 0.0
        %634 = vmatpush1.xpose.msra.mxu0 %v629
        %635 = vmatprep.subr.mxu0 0.0
        %636 = vmatpush1.xpose.msra.mxu0 0.0
        %637 = vmatprep.subr.mxu0 0.0
        %638 = vmatpush1.xpose.msra.mxu0 0.0
        %639 = vmatprep.subr.mxu0 0.0
        %640 = vmatpush1.xpose.msra.mxu0 0.0
        %641 = vmatprep.subr.mxu0 0.0
        %642 = vmatpush1.xpose.msra.mxu0 0.0
        %643 = vmatprep.subr.mxu0 0.0
        %644 = vmatpush1.xpose.msra.mxu0 0.0
        %645 = vmatprep.subr.mxu0 0.0
        %646 = vmatpush1.xpose.msra.mxu0 0.0
        %647 = vmatprep.subr.mxu0 0.0
        %648 = vmatpush1.xpose.msra.mxu0 0.0
        %649 = vmatprep.subr.mxu0 0.0
        %650 = vmatpush1.xpose.msra.mxu0 0.0
        %651 = vmatprep.subr.mxu0 0.0
        %652 = vmatpush1.xpose.msra.mxu0 0.0
        %653 = vmatprep.subr.mxu0 0.0
        %654 = vmatpush1.xpose.msra.mxu0 0.0
        %655 = vmatprep.subr.mxu0 0.0
        %656 = vmatpush1.xpose.msra.mxu0 0.0
        %657 = vmatprep.subr.mxu0 0.0
        %658 = vmatpush1.xpose.msra.mxu0 0.0
        %659 = vmatprep.subr.mxu0 0.0
        %660 = vmatpush1.xpose.msra.mxu0 0.0
        %661 = vmatprep.subr.mxu0 0.0
        %662 = vmatpush1.xpose.msra.mxu0 0.0
        %663 = vmatprep.subr.mxu0 0.0
        %664 = vmatpush1.xpose.msra.mxu0 0.0
        %665 = vmatprep.subr.mxu0 0.0
        %666 = vmatpush1.xpose.msra.mxu0 0.0
        %667 = vmatprep.subr.mxu0 0.0
        %668 = vmatpush1.xpose.msra.mxu0 0.0
        %669 = vmatprep.subr.mxu0 0.0
        %670 = vmatpush1.xpose.msra.mxu0 0.0
        %671 = vmatprep.subr.mxu0 0.0
        %672 = vmatpush1.xpose.msra.mxu0 0.0
        %673 = vmatprep.subr.mxu0 0.0
        %674 = vmatpush1.xpose.msra.mxu0 0.0
        %675 = vmatprep.subr.mxu0 0.0
        %676 = vmatpush1.xpose.msra.mxu0 0.0
        %677 = vmatprep.subr.mxu0 0.0
        %678 = vmatpush1.xpose.msra.mxu0 0.0
        %679 = vmatprep.subr.mxu0 0.0
        %680 = vmatpush1.xpose.msra.mxu0 0.0
        %681 = vmatprep.subr.mxu0 0.0
        %682 = vmatpush1.xpose.msra.mxu0 0.0
        %683 = vmatprep.subr.mxu0 0.0
        %684 = vmatpush1.xpose.msra.mxu0 0.0
        %685 = vmatprep.subr.mxu0 0.0
        %686 = vmatpush1.xpose.msra.mxu0 0.0
        %687 = vmatprep.subr.mxu0 0.0
        %688 = vmatpush1.xpose.msra.mxu0 0.0
        %689 = vmatprep.subr.mxu0 0.0
        %690 = vmatpush1.xpose.msra.mxu0 0.0
        %691 = vmatprep.subr.mxu0 0.0
        %692 = vmatpush1.xpose.msra.mxu0 0.0
        %693 = vmatprep.subr.mxu0 0.0
        %694 = vmatpush1.xpose.msra.mxu0 0.0
        %695 = vmatprep.mubr.f32.mxu0 0.0
        %696 = vmatmul.mubr.f32.gmra.mrb[0].mxu0 %v625
        %v697 = vpop.f32.mrb[0].mxu0
        %v698 = vadd.f32 0.0, %v697
        %v699 = vpop.f32.mrb[0].mxu0
        %700 = vdwg.mxu0
        %v701 = vsel %vm517, %v698, -inf
        %702 = vmax.xlane.f32.xlu0 %v701
        %v703 = vpop.xlane.xlu0 %702
        %v704 = vsub.f32 %v698, %v703
        %v705 = vmul.f32 %v704, 1.442695
        %v706 = vpow.pop %v705
        %v707 = vsel %vm517, %v706, 0.0
        %708 = vadd.xlane.f32.xlu0 %v707
        %v709 = vpop.xlane.xlu0 %708
        %v710 = vrcp.pop %v709
        %v711 = vmul.f32 %v709, %v710
        %v712 = vsub.f32 2.0, %v711
        %v713 = vmul.f32 %v710, %v712
        %v714 = vmul.f32 %v706, %v713
        %s715 = scalar_lea.vmem %s325, 8 [#allocation11]
        %716 = vst.msk [vmem:[%s715] sm:$0xff] %vm517, %v714
        %717 = vrot.lane.b32.xlu0 %v614, 56
        %v718 = vpop.permute.xlu0 %717
        %719 = vrot.lane.b32.xlu0 %v615, 56
        %v720 = vpop.permute.xlu0 %719
        %v724 = vsel %vm517, %v714, 0
        %726 = vmatprep.subr.mxu0 0.0
        %727 = vmatpush1.msra.mxu0 %v718
        %728 = vmatprep.subr.mxu0 0.0
        %729 = vmatpush1.msra.mxu0 %v720
        %730 = vmatprep.subr.mxu0 0.0
        %731 = vmatpush1.msra.mxu0 0.0
        %732 = vmatprep.subr.mxu0 0.0
        %733 = vmatpush1.msra.mxu0 0.0
        %734 = vmatprep.subr.mxu0 0.0
        %735 = vmatpush1.msra.mxu0 0.0
        %736 = vmatprep.subr.mxu0 0.0
        %737 = vmatpush1.msra.mxu0 0.0
        %738 = vmatprep.subr.mxu0 0.0
        %739 = vmatpush1.msra.mxu0 0.0
        %740 = vmatprep.subr.mxu0 0.0
        %741 = vmatpush1.msra.mxu0 0.0
        %742 = vmatprep.subr.mxu0 0.0
        %743 = vmatpush1.msra.mxu0 0.0
        %744 = vmatprep.subr.mxu0 0.0
        %745 = vmatpush1.msra.mxu0 0.0
        %746 = vmatprep.subr.mxu0 0.0
        %747 = vmatpush1.msra.mxu0 0.0
        %748 = vmatprep.subr.mxu0 0.0
        %749 = vmatpush1.msra.mxu0 0.0
        %750 = vmatprep.subr.mxu0 0.0
        %751 = vmatpush1.msra.mxu0 0.0
        %752 = vmatprep.subr.mxu0 0.0
        %753 = vmatpush1.msra.mxu0 0.0
        %754 = vmatprep.subr.mxu0 0.0
        %755 = vmatpush1.msra.mxu0 0.0
        %756 = vmatprep.subr.mxu0 0.0
        %757 = vmatpush1.msra.mxu0 0.0
        %758 = vmatprep.subr.mxu0 0.0
        %759 = vmatpush1.msra.mxu0 0.0
        %760 = vmatprep.subr.mxu0 0.0
        %761 = vmatpush1.msra.mxu0 0.0
        %762 = vmatprep.subr.mxu0 0.0
        %763 = vmatpush1.msra.mxu0 0.0
        %764 = vmatprep.subr.mxu0 0.0
        %765 = vmatpush1.msra.mxu0 0.0
        %766 = vmatprep.subr.mxu0 0.0
        %767 = vmatpush1.msra.mxu0 0.0
        %768 = vmatprep.subr.mxu0 0.0
        %769 = vmatpush1.msra.mxu0 0.0
        %770 = vmatprep.subr.mxu0 0.0
        %771 = vmatpush1.msra.mxu0 0.0
        %772 = vmatprep.subr.mxu0 0.0
        %773 = vmatpush1.msra.mxu0 0.0
        %774 = vmatprep.subr.mxu0 0.0
        %775 = vmatpush1.msra.mxu0 0.0
        %776 = vmatprep.subr.mxu0 0.0
        %777 = vmatpush1.msra.mxu0 0.0
        %778 = vmatprep.subr.mxu0 0.0
        %779 = vmatpush1.msra.mxu0 0.0
        %780 = vmatprep.subr.mxu0 0.0
        %781 = vmatpush1.msra.mxu0 0.0
        %782 = vmatprep.subr.mxu0 0.0
        %783 = vmatpush1.msra.mxu0 0.0
        %784 = vmatprep.subr.mxu0 0.0
        %785 = vmatpush1.msra.mxu0 0.0
        %786 = vmatprep.subr.mxu0 0.0
        %787 = vmatpush1.msra.mxu0 0.0
        %788 = vmatprep.subr.mxu0 0.0
        %789 = vmatpush1.msra.mxu0 0.0
        %790 = vmatprep.mubr.f32.mxu0 0.0
        %791 = vmatmul.mubr.f32.gmra.mrb[0].mxu0 %v724
        %v792 = vpop.f32.mrb[0].mxu0
        %v793 = vadd.f32 0.0, %v792
        %v794 = vpop.f32.mrb[0].mxu0
        %795 = vdwg.mxu0
        %797 = vrot.lane.b32.xlu0 %v793, 8
        %v798 = vpop.permute.xlu0 %797
        %vm800 = vcmask 130112
        %801 = vst.msk [vmem:[#allocation3] sm:$0xff] %vm800, %v798
        %v802 = vld [vmem:[%s429] sm:$0xff]
        %v803 = vld [vmem:[#allocation2] sm:$0xff]
        %v804 = vld [vmem:[#allocation2 + $0x8] sm:$0xff]
        %806 = vrot.lane.b32.xlu0 %v802, 112
        %v807 = vpop.permute.xlu0 %806
        %810 = vrot.lane.b32.xlu0 %v803, 80
        %v811 = vpop.permute.xlu0 %810
        %812 = vrot.lane.b32.xlu0 %v804, 80
        %v813 = vpop.permute.xlu0 %812
        %v814 = vsel %vm439, %v807, 0
        %v816 = vsel %vm439, %v811, 0
        %v818 = vsel %vm439, %v813, 0
        %820 = vmatprep.subr.mxu0 0.0
        %821 = vmatpush1.xpose.msra.mxu0 %v816
        %822 = vmatprep.subr.mxu0 0.0
        %823 = vmatpush1.xpose.msra.mxu0 %v818
        %824 = vmatprep.subr.mxu0 0.0
        %825 = vmatpush1.xpose.msra.mxu0 0.0
        %826 = vmatprep.subr.mxu0 0.0
        %827 = vmatpush1.xpose.msra.mxu0 0.0
        %828 = vmatprep.subr.mxu0 0.0
        %829 = vmatpush1.xpose.msra.mxu0 0.0
        %830 = vmatprep.subr.mxu0 0.0
        %831 = vmatpush1.xpose.msra.mxu0 0.0
        %832 = vmatprep.subr.mxu0 0.0
        %833 = vmatpush1.xpose.msra.mxu0 0.0
        %834 = vmatprep.subr.mxu0 0.0
        %835 = vmatpush1.xpose.msra.mxu0 0.0
        %836 = vmatprep.subr.mxu0 0.0
        %837 = vmatpush1.xpose.msra.mxu0 0.0
        %838 = vmatprep.subr.mxu0 0.0
        %839 = vmatpush1.xpose.msra.mxu0 0.0
        %840 = vmatprep.subr.mxu0 0.0
        %841 = vmatpush1.xpose.msra.mxu0 0.0
        %842 = vmatprep.subr.mxu0 0.0
        %843 = vmatpush1.xpose.msra.mxu0 0.0
        %844 = vmatprep.subr.mxu0 0.0
        %845 = vmatpush1.xpose.msra.mxu0 0.0
        %846 = vmatprep.subr.mxu0 0.0
        %847 = vmatpush1.xpose.msra.mxu0 0.0
        %848 = vmatprep.subr.mxu0 0.0
        %849 = vmatpush1.xpose.msra.mxu0 0.0
        %850 = vmatprep.subr.mxu0 0.0
        %851 = vmatpush1.xpose.msra.mxu0 0.0
        %852 = vmatprep.subr.mxu0 0.0
        %853 = vmatpush1.xpose.msra.mxu0 0.0
        %854 = vmatprep.subr.mxu0 0.0
        %855 = vmatpush1.xpose.msra.mxu0 0.0
        %856 = vmatprep.subr.mxu0 0.0
        %857 = vmatpush1.xpose.msra.mxu0 0.0
        %858 = vmatprep.subr.mxu0 0.0
        %859 = vmatpush1.xpose.msra.mxu0 0.0
        %860 = vmatprep.subr.mxu0 0.0
        %861 = vmatpush1.xpose.msra.mxu0 0.0
        %862 = vmatprep.subr.mxu0 0.0
        %863 = vmatpush1.xpose.msra.mxu0 0.0
        %864 = vmatprep.subr.mxu0 0.0
        %865 = vmatpush1.xpose.msra.mxu0 0.0
        %866 = vmatprep.subr.mxu0 0.0
        %867 = vmatpush1.xpose.msra.mxu0 0.0
        %868 = vmatprep.subr.mxu0 0.0
        %869 = vmatpush1.xpose.msra.mxu0 0.0
        %870 = vmatprep.subr.mxu0 0.0
        %871 = vmatpush1.xpose.msra.mxu0 0.0
        %872 = vmatprep.subr.mxu0 0.0
        %873 = vmatpush1.xpose.msra.mxu0 0.0
        %874 = vmatprep.subr.mxu0 0.0
        %875 = vmatpush1.xpose.msra.mxu0 0.0
        %876 = vmatprep.subr.mxu0 0.0
        %877 = vmatpush1.xpose.msra.mxu0 0.0
        %878 = vmatprep.subr.mxu0 0.0
        %879 = vmatpush1.xpose.msra.mxu0 0.0
        %880 = vmatprep.subr.mxu0 0.0
        %881 = vmatpush1.xpose.msra.mxu0 0.0
        %882 = vmatprep.subr.mxu0 0.0
        %883 = vmatpush1.xpose.msra.mxu0 0.0
        %884 = vmatprep.mubr.f32.mxu0 0.0
        %885 = vmatmul.mubr.f32.gmra.mrb[0].mxu0 %v814
        %v886 = vpop.f32.mrb[0].mxu0
        %v887 = vadd.f32 0.0, %v886
        %v888 = vpop.f32.mrb[0].mxu0
        %889 = vdwg.mxu0
        %v890 = vsel %vm517, %v887, -inf
        %891 = vmax.xlane.f32.xlu0 %v890
        %v892 = vpop.xlane.xlu0 %891
        %v893 = vsub.f32 %v887, %v892
        %v894 = vmul.f32 %v893, 1.442695
        %v895 = vpow.pop %v894
        %v896 = vsel %vm517, %v895, 0.0
        %897 = vadd.xlane.f32.xlu0 %v896
        %v898 = vpop.xlane.xlu0 %897
        %v899 = vrcp.pop %v898
        %v900 = vmul.f32 %v898, %v899
        %v901 = vsub.f32 2.0, %v900
        %v902 = vmul.f32 %v899, %v901
        %v903 = vmul.f32 %v895, %v902
        %s904 = scalar_lea.vmem %s325, 16 [#allocation11]
        %905 = vst.msk [vmem:[%s904] sm:$0xff] %vm517, %v903
        %906 = vrot.lane.b32.xlu0 %v803, 48
        %v907 = vpop.permute.xlu0 %906
        %908 = vrot.lane.b32.xlu0 %v804, 48
        %v909 = vpop.permute.xlu0 %908
        %v913 = vsel %vm517, %v903, 0
        %915 = vmatprep.subr.mxu0 0.0
        %916 = vmatpush1.msra.mxu0 %v907
        %917 = vmatprep.subr.mxu0 0.0
        %918 = vmatpush1.msra.mxu0 %v909
        %919 = vmatprep.subr.mxu0 0.0
        %920 = vmatpush1.msra.mxu0 0.0
        %921 = vmatprep.subr.mxu0 0.0
        %922 = vmatpush1.msra.mxu0 0.0
        %923 = vmatprep.subr.mxu0 0.0
        %924 = vmatpush1.msra.mxu0 0.0
        %925 = vmatprep.subr.mxu0 0.0
        %926 = vmatpush1.msra.mxu0 0.0
        %927 = vmatprep.subr.mxu0 0.0
        %928 = vmatpush1.msra.mxu0 0.0
        %929 = vmatprep.subr.mxu0 0.0
        %930 = vmatpush1.msra.mxu0 0.0
        %931 = vmatprep.subr.mxu0 0.0
        %932 = vmatpush1.msra.mxu0 0.0
        %933 = vmatprep.subr.mxu0 0.0
        %934 = vmatpush1.msra.mxu0 0.0
        %935 = vmatprep.subr.mxu0 0.0
        %936 = vmatpush1.msra.mxu0 0.0
        %937 = vmatprep.subr.mxu0 0.0
        %938 = vmatpush1.msra.mxu0 0.0
        %939 = vmatprep.subr.mxu0 0.0
        %940 = vmatpush1.msra.mxu0 0.0
        %941 = vmatprep.subr.mxu0 0.0
        %942 = vmatpush1.msra.mxu0 0.0
        %943 = vmatprep.subr.mxu0 0.0
        %944 = vmatpush1.msra.mxu0 0.0
        %945 = vmatprep.subr.mxu0 0.0
        %946 = vmatpush1.msra.mxu0 0.0
        %947 = vmatprep.subr.mxu0 0.0
        %948 = vmatpush1.msra.mxu0 0.0
        %949 = vmatprep.subr.mxu0 0.0
        %950 = vmatpush1.msra.mxu0 0.0
        %951 = vmatprep.subr.mxu0 0.0
        %952 = vmatpush1.msra.mxu0 0.0
        %953 = vmatprep.subr.mxu0 0.0
        %954 = vmatpush1.msra.mxu0 0.0
        %955 = vmatprep.subr.mxu0 0.0
        %956 = vmatpush1.msra.mxu0 0.0
        %957 = vmatprep.subr.mxu0 0.0
        %958 = vmatpush1.msra.mxu0 0.0
        %959 = vmatprep.subr.mxu0 0.0
        %960 = vmatpush1.msra.mxu0 0.0
        %961 = vmatprep.subr.mxu0 0.0
        %962 = vmatpush1.msra.mxu0 0.0
        %963 = vmatprep.subr.mxu0 0.0
        %964 = vmatpush1.msra.mxu0 0.0
        %965 = vmatprep.subr.mxu0 0.0
        %966 = vmatpush1.msra.mxu0 0.0
        %967 = vmatprep.subr.mxu0 0.0
        %968 = vmatpush1.msra.mxu0 0.0
        %969 = vmatprep.subr.mxu0 0.0
        %970 = vmatpush1.msra.mxu0 0.0
        %971 = vmatprep.subr.mxu0 0.0
        %972 = vmatpush1.msra.mxu0 0.0
        %973 = vmatprep.subr.mxu0 0.0
        %974 = vmatpush1.msra.mxu0 0.0
        %975 = vmatprep.subr.mxu0 0.0
        %976 = vmatpush1.msra.mxu0 0.0
        %977 = vmatprep.subr.mxu0 0.0
        %978 = vmatpush1.msra.mxu0 0.0
        %979 = vmatprep.mubr.f32.mxu0 0.0
        %980 = vmatmul.mubr.f32.gmra.mrb[0].mxu0 %v913
        %v981 = vpop.f32.mrb[0].mxu0
        %v982 = vadd.f32 0.0, %v981
        %v983 = vpop.f32.mrb[0].mxu0
        %984 = vdwg.mxu0
        %986 = vrot.lane.b32.xlu0 %v982, 16
        %v987 = vpop.permute.xlu0 %986
        %vm989 = vcmask 195712
        %990 = vst.msk [vmem:[#allocation3] sm:$0xff] %vm989, %v987
        %v991 = vld [vmem:[%s429] sm:$0xff]
        %v992 = vld [vmem:[#allocation2] sm:$0xff]
        %v993 = vld [vmem:[#allocation2 + $0x8] sm:$0xff]
        %995 = vrot.lane.b32.xlu0 %v991, 104
        %v996 = vpop.permute.xlu0 %995
        %999 = vrot.lane.b32.xlu0 %v992, 72
        %v1000 = vpop.permute.xlu0 %999
        %1001 = vrot.lane.b32.xlu0 %v993, 72
        %v1002 = vpop.permute.xlu0 %1001
        %v1003 = vsel %vm439, %v996, 0
        %v1005 = vsel %vm439, %v1000, 0
        %v1007 = vsel %vm439, %v1002, 0
        %1009 = vmatprep.subr.mxu0 0.0
        %1010 = vmatpush1.xpose.msra.mxu0 %v1005
        %1011 = vmatprep.subr.mxu0 0.0
        %1012 = vmatpush1.xpose.msra.mxu0 %v1007
        %1013 = vmatprep.subr.mxu0 0.0
        %1014 = vmatpush1.xpose.msra.mxu0 0.0
        %1015 = vmatprep.subr.mxu0 0.0
        %1016 = vmatpush1.xpose.msra.mxu0 0.0
        %1017 = vmatprep.subr.mxu0 0.0
        %1018 = vmatpush1.xpose.msra.mxu0 0.0
        %1019 = vmatprep.subr.mxu0 0.0
        %1020 = vmatpush1.xpose.msra.mxu0 0.0
        %1021 = vmatprep.subr.mxu0 0.0
        %1022 = vmatpush1.xpose.msra.mxu0 0.0
        %1023 = vmatprep.subr.mxu0 0.0
        %1024 = vmatpush1.xpose.msra.mxu0 0.0
        %1025 = vmatprep.subr.mxu0 0.0
        %1026 = vmatpush1.xpose.msra.mxu0 0.0
        %1027 = vmatprep.subr.mxu0 0.0
        %1028 = vmatpush1.xpose.msra.mxu0 0.0
        %1029 = vmatprep.subr.mxu0 0.0
        %1030 = vmatpush1.xpose.msra.mxu0 0.0
        %1031 = vmatprep.subr.mxu0 0.0
        %1032 = vmatpush1.xpose.msra.mxu0 0.0
        %1033 = vmatprep.subr.mxu0 0.0
        %1034 = vmatpush1.xpose.msra.mxu0 0.0
        %1035 = vmatprep.subr.mxu0 0.0
        %1036 = vmatpush1.xpose.msra.mxu0 0.0
        %1037 = vmatprep.subr.mxu0 0.0
        %1038 = vmatpush1.xpose.msra.mxu0 0.0
        %1039 = vmatprep.subr.mxu0 0.0
        %1040 = vmatpush1.xpose.msra.mxu0 0.0
        %1041 = vmatprep.subr.mxu0 0.0
        %1042 = vmatpush1.xpose.msra.mxu0 0.0
        %1043 = vmatprep.subr.mxu0 0.0
        %1044 = vmatpush1.xpose.msra.mxu0 0.0
        %1045 = vmatprep.subr.mxu0 0.0
        %1046 = vmatpush1.xpose.msra.mxu0 0.0
        %1047 = vmatprep.subr.mxu0 0.0
        %1048 = vmatpush1.xpose.msra.mxu0 0.0
        %1049 = vmatprep.subr.mxu0 0.0
        %1050 = vmatpush1.xpose.msra.mxu0 0.0
        %1051 = vmatprep.subr.mxu0 0.0
        %1052 = vmatpush1.xpose.msra.mxu0 0.0
        %1053 = vmatprep.subr.mxu0 0.0
        %1054 = vmatpush1.xpose.msra.mxu0 0.0
        %1055 = vmatprep.subr.mxu0 0.0
        %1056 = vmatpush1.xpose.msra.mxu0 0.0
        %1057 = vmatprep.subr.mxu0 0.0
        %1058 = vmatpush1.xpose.msra.mxu0 0.0
        %1059 = vmatprep.subr.mxu0 0.0
        %1060 = vmatpush1.xpose.msra.mxu0 0.0
        %1061 = vmatprep.subr.mxu0 0.0
        %1062 = vmatpush1.xpose.msra.mxu0 0.0
        %1063 = vmatprep.subr.mxu0 0.0
        %1064 = vmatpush1.xpose.msra.mxu0 0.0
        %1065 = vmatprep.subr.mxu0 0.0
        %1066 = vmatpush1.xpose.msra.mxu0 0.0
        %1067 = vmatprep.subr.mxu0 0.0
        %1068 = vmatpush1.xpose.msra.mxu0 0.0
        %1069 = vmatprep.subr.mxu0 0.0
        %1070 = vmatpush1.xpose.msra.mxu0 0.0
        %1071 = vmatprep.subr.mxu0 0.0
        %1072 = vmatpush1.xpose.msra.mxu0 0.0
        %1073 = vmatprep.mubr.f32.mxu0 0.0
        %1074 = vmatmul.mubr.f32.gmra.mrb[0].mxu0 %v1003
        %v1075 = vpop.f32.mrb[0].mxu0
        %v1076 = vadd.f32 0.0, %v1075
        %v1077 = vpop.f32.mrb[0].mxu0
        %1078 = vdwg.mxu0
        %v1079 = vsel %vm517, %v1076, -inf
        %1080 = vmax.xlane.f32.xlu0 %v1079
        %v1081 = vpop.xlane.xlu0 %1080
        %v1082 = vsub.f32 %v1076, %v1081
        %v1083 = vmul.f32 %v1082, 1.442695
        %v1084 = vpow.pop %v1083
        %v1085 = vsel %vm517, %v1084, 0.0
        %1086 = vadd.xlane.f32.xlu0 %v1085
        %v1087 = vpop.xlane.xlu0 %1086
        %v1088 = vrcp.pop %v1087
        %v1089 = vmul.f32 %v1087, %v1088
        %v1090 = vsub.f32 2.0, %v1089
        %v1091 = vmul.f32 %v1088, %v1090
        %v1092 = vmul.f32 %v1084, %v1091
        %s1093 = scalar_lea.vmem %s325, 24 [#allocation11]
        %1094 = vst.msk [vmem:[%s1093] sm:$0xff] %vm517, %v1092
        %1095 = vrot.lane.b32.xlu0 %v992, 40
        %v1096 = vpop.permute.xlu0 %1095
        %1097 = vrot.lane.b32.xlu0 %v993, 40
        %v1098 = vpop.permute.xlu0 %1097
        %v1102 = vsel %vm517, %v1092, 0
        %1104 = vmatprep.subr.mxu0 0.0
        %1105 = vmatpush1.msra.mxu0 %v1096
        %1106 = vmatprep.subr.mxu0 0.0
        %1107 = vmatpush1.msra.mxu0 %v1098
        %1108 = vmatprep.subr.mxu0 0.0
        %1109 = vmatpush1.msra.mxu0 0.0
        %1110 = vmatprep.subr.mxu0 0.0
        %1111 = vmatpush1.msra.mxu0 0.0
        %1112 = vmatprep.subr.mxu0 0.0
        %1113 = vmatpush1.msra.mxu0 0.0
        %1114 = vmatprep.subr.mxu0 0.0
        %1115 = vmatpush1.msra.mxu0 0.0
        %1116 = vmatprep.subr.mxu0 0.0
        %1117 = vmatpush1.msra.mxu0 0.0
        %1118 = vmatprep.subr.mxu0 0.0
        %1119 = vmatpush1.msra.mxu0 0.0
        %1120 = vmatprep.subr.mxu0 0.0
        %1121 = vmatpush1.msra.mxu0 0.0
        %1122 = vmatprep.subr.mxu0 0.0
        %1123 = vmatpush1.msra.mxu0 0.0
        %1124 = vmatprep.subr.mxu0 0.0
        %1125 = vmatpush1.msra.mxu0 0.0
        %1126 = vmatprep.subr.mxu0 0.0
        %1127 = vmatpush1.msra.mxu0 0.0
        %1128 = vmatprep.subr.mxu0 0.0
        %1129 = vmatpush1.msra.mxu0 0.0
        %1130 = vmatprep.subr.mxu0 0.0
        %1131 = vmatpush1.msra.mxu0 0.0
        %1132 = vmatprep.subr.mxu0 0.0
        %1133 = vmatpush1.msra.mxu0 0.0
        %1134 = vmatprep.subr.mxu0 0.0
        %1135 = vmatpush1.msra.mxu0 0.0
        %1136 = vmatprep.subr.mxu0 0.0
        %1137 = vmatpush1.msra.mxu0 0.0
        %1138 = vmatprep.subr.mxu0 0.0
        %1139 = vmatpush1.msra.mxu0 0.0
        %1140 = vmatprep.subr.mxu0 0.0
        %1141 = vmatpush1.msra.mxu0 0.0
        %1142 = vmatprep.subr.mxu0 0.0
        %1143 = vmatpush1.msra.mxu0 0.0
        %1144 = vmatprep.subr.mxu0 0.0
        %1145 = vmatpush1.msra.mxu0 0.0
        %1146 = vmatprep.subr.mxu0 0.0
        %1147 = vmatpush1.msra.mxu0 0.0
        %1148 = vmatprep.subr.mxu0 0.0
        %1149 = vmatpush1.msra.mxu0 0.0
        %1150 = vmatprep.subr.mxu0 0.0
        %1151 = vmatpush1.msra.mxu0 0.0
        %1152 = vmatprep.subr.mxu0 0.0
        %1153 = vmatpush1.msra.mxu0 0.0
        %1154 = vmatprep.subr.mxu0 0.0
        %1155 = vmatpush1.msra.mxu0 0.0
        %1156 = vmatprep.subr.mxu0 0.0
        %1157 = vmatpush1.msra.mxu0 0.0
        %1158 = vmatprep.subr.mxu0 0.0
        %1159 = vmatpush1.msra.mxu0 0.0
        %1160 = vmatprep.subr.mxu0 0.0
        %1161 = vmatpush1.msra.mxu0 0.0
        %1162 = vmatprep.subr.mxu0 0.0
        %1163 = vmatpush1.msra.mxu0 0.0
        %1164 = vmatprep.subr.mxu0 0.0
        %1165 = vmatpush1.msra.mxu0 0.0
        %1166 = vmatprep.subr.mxu0 0.0
        %1167 = vmatpush1.msra.mxu0 0.0
        %1168 = vmatprep.mubr.f32.mxu0 0.0
        %1169 = vmatmul.mubr.f32.gmra.mrb[0].mxu0 %v1102
        %v1170 = vpop.f32.mrb[0].mxu0
        %v1171 = vadd.f32 0.0, %v1170
        %v1172 = vpop.f32.mrb[0].mxu0
        %1173 = vdwg.mxu0
        %1175 = vrot.lane.b32.xlu0 %v1171, 24
        %v1176 = vpop.permute.xlu0 %1175
        %vm1178 = vcmask 261312
        %1179 = vst.msk [vmem:[#allocation3] sm:$0xff] %vm1178, %v1176
        %v1180 = vld [vmem:[#allocation3] sm:$0xff]
        %v1181 = vld [vmem:[#allocation9] sm:$0xff]
        %v1182 = vld [vmem:[#allocation9 + $0x8] sm:$0xff]
        %v1183 = vld [vmem:[#allocation9 + $0x10] sm:$0xff]
        %v1184 = vld [vmem:[#allocation9 + $0x18] sm:$0xff]
        %v1185 = vld [vmem:[%s4] sm:$0x1]
        %v1187 = vlaneseq
        %v1188 = vshrl.u32 %v1187, 7
        %v1189 = vsub.s32 0, %v1188
        %v1190 = vrot.slane %v1185, %v1189
        %vm1192 = vcmask 261120
        %v1194 = vsel %vm1192, %v1180, 0
        %1196 = vmatprep.subr.mxu0 0.0
        %1197 = vmatpush1.msra.mxu0 %v1181
        %1198 = vmatprep.subr.mxu0 0.0
        %1199 = vmatpush1.msra.mxu0 %v1182
        %1200 = vmatprep.subr.mxu0 0.0
        %1201 = vmatpush1.msra.mxu0 %v1183
        %1202 = vmatprep.subr.mxu0 0.0
        %1203 = vmatpush1.msra.mxu0 %v1184
        %1204 = vmatprep.subr.mxu0 0.0
        %1205 = vmatpush1.msra.mxu0 0.0
        %1206 = vmatprep.subr.mxu0 0.0
        %1207 = vmatpush1.msra.mxu0 0.0
        %1208 = vmatprep.subr.mxu0 0.0
        %1209 = vmatpush1.msra.mxu0 0.0
        %1210 = vmatprep.subr.mxu0 0.0
        %1211 = vmatpush1.msra.mxu0 0.0
        %1212 = vmatprep.subr.mxu0 0.0
        %1213 = vmatpush1.msra.mxu0 0.0
        %1214 = vmatprep.subr.mxu0 0.0
        %1215 = vmatpush1.msra.mxu0 0.0
        %1216 = vmatprep.subr.mxu0 0.0
        %1217 = vmatpush1.msra.mxu0 0.0
        %1218 = vmatprep.subr.mxu0 0.0
        %1219 = vmatpush1.msra.mxu0 0.0
        %1220 = vmatprep.subr.mxu0 0.0
        %1221 = vmatpush1.msra.mxu0 0.0
        %1222 = vmatprep.subr.mxu0 0.0
        %1223 = vmatpush1.msra.mxu0 0.0
        %1224 = vmatprep.subr.mxu0 0.0
        %1225 = vmatpush1.msra.mxu0 0.0
        %1226 = vmatprep.subr.mxu0 0.0
        %1227 = vmatpush1.msra.mxu0 0.0
        %1228 = vmatprep.subr.mxu0 0.0
        %1229 = vmatpush1.msra.mxu0 0.0
        %1230 = vmatprep.subr.mxu0 0.0
        %1231 = vmatpush1.msra.mxu0 0.0
        %1232 = vmatprep.subr.mxu0 0.0
        %1233 = vmatpush1.msra.mxu0 0.0
        %1234 = vmatprep.subr.mxu0 0.0
        %1235 = vmatpush1.msra.mxu0 0.0
        %1236 = vmatprep.subr.mxu0 0.0
        %1237 = vmatpush1.msra.mxu0 0.0
        %1238 = vmatprep.subr.mxu0 0.0
        %1239 = vmatpush1.msra.mxu0 0.0
        %1240 = vmatprep.subr.mxu0 0.0
        %1241 = vmatpush1.msra.mxu0 0.0
        %1242 = vmatprep.subr.mxu0 0.0
        %1243 = vmatpush1.msra.mxu0 0.0
        %1244 = vmatprep.subr.mxu0 0.0
        %1245 = vmatpush1.msra.mxu0 0.0
        %1246 = vmatprep.subr.mxu0 0.0
        %1247 = vmatpush1.msra.mxu0 0.0
        %1248 = vmatprep.subr.mxu0 0.0
        %1249 = vmatpush1.msra.mxu0 0.0
        %1250 = vmatprep.subr.mxu0 0.0
        %1251 = vmatpush1.msra.mxu0 0.0
        %1252 = vmatprep.subr.mxu0 0.0
        %1253 = vmatpush1.msra.mxu0 0.0
        %1254 = vmatprep.subr.mxu0 0.0
        %1255 = vmatpush1.msra.mxu0 0.0
        %1256 = vmatprep.subr.mxu0 0.0
        %1257 = vmatpush1.msra.mxu0 0.0
        %1258 = vmatprep.subr.mxu0 0.0
        %1259 = vmatpush1.msra.mxu0 0.0
        %1260 = vmatprep.mubr.f32.mxu0 0.0
        %1261 = vmatmul.mubr.f32.gmra.mrb[0].mxu0 %v1194
        %v1262 = vpop.f32.mrb[0].mxu0
        %v1263 = vadd.f32 %v1190, %v1262
        %v1264 = vpop.f32.mrb[0].mxu0
        %1265 = vdwg.mxu0
        %1266 = vst.msk [vmem:[%s318] sm:$0xff] %vm1192, %v1263
        %s1267 = sand.u32 %s160, 1
        %s1268 = scalar_lea.sflag [#allocation6], %s1267
        %s1269 = sand.u32 %s160, 1
        %s1270 = smul.addr %s1269, 8
        %s1271 = scalar_lea.vmem [#allocation10], %s1270
        %s1272 = sand.u32 %s188, 1
        %s1273 = scalar_lea.sflag [#allocation12], %s1272
        %s1274 = sand.u32 %s188, 1
        %s1275 = smul.addr %s1274, 32
        %s1276 = scalar_lea.vmem [#allocation11], %s1275
        // Predicated region
        $region57: #{tpu_custom_call.1} parent=39 // pred_check
          %p1277 = pneg %p170
        $region58: #{tpu_custom_call.1} parent=39 // pred_check_branch
          %1279 = sbr.rel (%p1277) target = $region60
        $region59: #{tpu_custom_call.1} parent=39 // pred_region
          %s1281 = ssub.s32 128, 128
          %1282 = vsyncadd %s1268, %s1281
          %s1283 = smul.addr %s32, 2
          %s1284 = sadd.s32 %s33, %s1283
          %s1285 = smul.addr %s1284, 128
          %s1286 = scalar_lea.hbm %s5, %s1285
          %s1288 = sshll.u32 %s1271, 4
          %s1289 = int_to_ptr.vmem [resolvable:$true] %s1288
          %1291 = dma.vmem_to_hbm [thread:$0]  %s1289, 128, %s1286, %s1268
        $region60: #{tpu_custom_call.1} parent=39 // pred_fallthru
          _
        // Predicated region
        $region61: #{tpu_custom_call.1} parent=39 // pred_check
          %p1292 = pneg %p198
        $region62: #{tpu_custom_call.1} parent=39 // pred_check_branch
          %1294 = sbr.rel (%p1292) target = $region64
        $region63: #{tpu_custom_call.1} parent=39 // pred_region
          %s1296 = ssub.s32 512, 512
          %1297 = vsyncadd %s1273, %s1296
          %s1298 = smul.addr %s32, 8
          %s1299 = sadd.s32 %s33, %s1298
          %s1300 = smul.addr %s1299, 128
          %s1301 = scalar_lea.hbm %s6, %s1300
          %s1302 = sshll.u32 %s1276, 4
          %s1303 = int_to_ptr.vmem [resolvable:$true] %s1302
          %1308 = dma.vmem_to_hbm [thread:$0]  %s1303, 512, %s1301, %s1273, 128, 256, 8
        $region64: #{tpu_custom_call.1} parent=39 // pred_fallthru
          _
      $region40: #{tpu_custom_call.1} parent=5 // pred_fallthru
        _
      %p1309 = scmp.le.s32.totalorder 2, %s23
      // Predicated region
      $region65: #{tpu_custom_call.1} parent=5 // pred_check
        %p1310 = pneg %p1309
      $region66: #{tpu_custom_call.1} parent=5 // pred_check_branch
        %1312 = sbr.rel (%p1310) target = $region68
      $region67: #{tpu_custom_call.1} parent=5 // pred_region
        %s1313 = ssub.s32 %s23, 2
        // Predicated region
        $region69: #{tpu_custom_call.1} parent=67 // pred_check
          %p1314 = pneg %p176
        $region70: #{tpu_custom_call.1} parent=67 // pred_check_branch
          %1316 = sbr.rel (%p1314) target = $region72
        $region71: #{tpu_custom_call.1} parent=67 // pred_region
          %s1317 = sand.u32 %s161, 1
          %s1318 = scalar_lea.sflag [#allocation6], %s1317
          %s1319 = sand.u32 %s161, 1
          %s1320 = smul.addr %s1319, 8
          %s1321 = scalar_lea.vmem [#allocation10], %s1320
          %1322 = dma.done %s1318, 128
        $region72: #{tpu_custom_call.1} parent=67 // pred_fallthru
          _
        // Predicated region
        $region73: #{tpu_custom_call.1} parent=67 // pred_check
          %p1323 = pneg %p204
        $region74: #{tpu_custom_call.1} parent=67 // pred_check_branch
          %1325 = sbr.rel (%p1323) target = $region76
        $region75: #{tpu_custom_call.1} parent=67 // pred_region
          %s1326 = sand.u32 %s189, 1
          %s1327 = scalar_lea.sflag [#allocation12], %s1326
          %s1328 = sand.u32 %s189, 1
          %s1329 = smul.addr %s1328, 32
          %s1330 = scalar_lea.vmem [#allocation11], %s1329
          %1331 = dma.done %s1327, 512
        $region76: #{tpu_custom_call.1} parent=67 // pred_fallthru
          _
      $region68: #{tpu_custom_call.1} parent=5 // pred_fallthru
        _
    $region6: #{tpu_custom_call.1} parent=1 // loop_footer
      %s27 = sadd.s32 1, %s23
    $region7: #{tpu_custom_call.1} parent=1 // loop_footer_branch
      %22 = sbr.rel target = $region3
    $region8: #{tpu_custom_call.1} parent=1 // loop_exit
      _
    %1332 = vsyncpa [#allocation5], 1
    %s1333 = scalar_lea.sflag [#allocation5], 1
    %1334 = vsyncpa %s1333, 1
    %1335 = vsyncpa [#allocation8], 1
    %1336 = vsyncpa [#allocation6], 1
    %s1337 = scalar_lea.sflag [#allocation6], 1
    %1338 = vsyncpa %s1337, 1
    %1339 = vsyncpa [#allocation12], 1
    %s1340 = scalar_lea.sflag [#allocation12], 1
    %1341 = vsyncpa %s1340, 1

</llo_original>
